<compile_context>
chip_gen: v7x
topology: tpu7x:2x2x1
jax: 0.10.0
libtpu: 0.0.40
codegen_flags: <defaults>
</compile_context>

<pallas_src>
import jax
import jax.numpy as jnp
from jax.experimental import pallas as pl
from jax.experimental.pallas import tpu as pltpu

EPS_COS = 1e-8        # torch.nn.functional.cosine_similarity default eps
EPS_IDF = 1e-6        # max(gen_faq_idf_vector.sum(), 1e-6) in the reference
NEG_BIAS = -1e30      # finite additive mask value (never -inf: no NaN risk)


# --------------------------------------------------------------------------
# Fused kernel: BERT-score for ALL candidates + contrastive loss epilogue
# --------------------------------------------------------------------------
def _fused_qa_kernel(cand_ref, gen_ref, bias_ref, idf_ref, th_ref, en_ref,
                     scores_ref, closs_ref):
    n = scores_ref.shape[0]              # number of candidate sequences
    lc = cand_ref.shape[0] // n          # padded candidate length (sublane-aligned)
    lq = gen_ref.shape[1 - 1]            # padded generated-FAQ length

    g = gen_ref[...].astype(jnp.float32)    # (Lq, H)     generated-FAQ tokens
    c = cand_ref[...].astype(jnp.float32)   # (n*Lc, H)   all candidates, flat

    # Pre-normalize rows; divides become EUP rsqrt (off the VALU path).
    # 1 / max(||x||, eps) == rsqrt(max(||x||^2, eps^2)).
    g_hat = g * jax.lax.rsqrt(
        jnp.maximum(jnp.sum(g * g, axis=-1, keepdims=True), EPS_COS * EPS_COS))
    c_hat = c * jax.lax.rsqrt(
        jnp.maximum(jnp.sum(c * c, axis=-1, keepdims=True), EPS_COS * EPS_COS))

    # One wide MXU matmul, contraction over the hidden dim of BOTH operands
    # (transposed-RHS path) -> candidate-major similarities (n*Lc, Lq).
    sim = jax.lax.dot_general(
        c_hat, g_hat,
        dimension_numbers=(((1,), (1,)), ((), ())),
        preferred_element_type=jnp.float32)

    # Additive padding bias: 0.0 on valid candidate tokens, -1e30 on padding.
    sim = sim + bias_ref[...]                       # (n*Lc, Lq) + (n*Lc, 1)

    # Greedy match per candidate: free leading-dim split + sublane max reduce.
    max_sim = jnp.max(sim.reshape(n, lc, lq), axis=1)          # (n, Lq)

    # idf-weighted reduction on VPU + XLU (stays off the MXU result FIFO).
    idf = idf_ref[...]                                          # (1, Lq) f32
    idf_sum = jnp.maximum(jnp.sum(idf, axis=-1, keepdims=True), EPS_IDF)  # (1,1)
    weighted = jnp.sum(max_sim * idf, axis=-1, keepdims=True)   # (n, 1)
    # Exact divide (scores feed argmax / argsort downstream), then ReLU.
    scores_ref[...] = jnp.maximum(weighted / idf_sum, 0.0)
    # TODO(synk): a zero-length candidate (all tokens masked) scores 0 here;
    # the torch reference would index an empty slice and error instead.

    # ---- contrastive loss epilogue: 1 - cos(mean(th), mean(en)) ----
    th = jnp.mean(th_ref[...].astype(jnp.float32), axis=0, keepdims=True)  # (1, H)
    en = jnp.mean(en_ref[...].astype(jnp.float32), axis=0, keepdims=True)  # (1, H)
    dot = jnp.sum(th * en, axis=-1, keepdims=True)                         # (1, 1)
    inv_nth = jax.lax.rsqrt(
        jnp.maximum(jnp.sum(th * th, axis=-1, keepdims=True), EPS_COS * EPS_COS))
    inv_nen = jax.lax.rsqrt(
        jnp.maximum(jnp.sum(en * en, axis=-1, keepdims=True), EPS_COS * EPS_COS))
    closs_ref[...] = 1.0 - dot * inv_nth * inv_nen


def _pad_last_to(x, multiple):
    pad = (-x.shape[-1]) % multiple
    if pad:
        x = jnp.pad(x, [(0, 0)] * (x.ndim - 1) + [(0, pad)])
    return x


def _pad_axis_to(x, axis, multiple):
    pad = (-x.shape[axis]) % multiple
    if pad:
        widths = [(0, 0)] * x.ndim
        widths[axis] = (0, pad)
        x = jnp.pad(x, widths)
    return x


def qa_scores_and_contrastive(gen_vecs, idf_row, cand_banks, cand_lens,
                              emb_th, emb_en):
    """Scores every candidate sequence against the generated-FAQ embeddings
    and computes the EN/TH contrastive loss — in one grid-free Pallas launch.

    gen_vecs:   (Lq, H)       generated-FAQ encoder embeddings
    idf_row:    (1, Lq)       idf weights (lane-major), zero past gen length
    cand_banks: (n, Lc, H)    candidate encoder embeddings (questions+answers)
    cand_lens:  (n,) int32    valid token count per candidate
    emb_th/en:  (S, H)        encoder embeddings of the TH / EN CHQ
    """
    # Zero-pad hidden dim to a multiple of 128: full lane occupancy for the
    # VPU / row-norm / MXU work; dots and norms are unchanged.
    gen_vecs = _pad_last_to(gen_vecs, 128)
    cand_banks = _pad_last_to(cand_banks, 128)
    emb_th = _pad_last_to(emb_th, 128)
    emb_en = _pad_last_to(emb_en, 128)

    # Sublane-align the generated-FAQ length and the per-candidate length
    # (zero idf / additive bias already neutralize the extra rows).
    gen_vecs = _pad_axis_to(gen_vecs, 0, 8)
    idf_row = _pad_last_to(idf_row, 8)
    cand_banks = _pad_axis_to(cand_banks, 1, 8)

    n, lc, h = cand_banks.shape
    cand_all = cand_banks.reshape(n * lc, h)

    # Additive padding bias column: 0.0 for valid candidate tokens, -1e30 for
    # padding (one vadd per vreg in-kernel instead of compare + select).
    row = jnp.arange(n * lc, dtype=jnp.int32)
    valid = (row % lc) < cand_lens[row // lc]
    bias_col = ((valid.astype(jnp.float32) - 1.0) * (-NEG_BIAS))[:, None]  # (n*Lc, 1)

    vmem = pl.BlockSpec(memory_space=pltpu.MemorySpace.VMEM)
    scores, closs = pl.pallas_call(
        _fused_qa_kernel,
        in_specs=[vmem] * 6,
        out_specs=(vmem, vmem),
        out_shape=(jax.ShapeDtypeStruct((n, 1), jnp.float32),   # per-candidate score
                   jax.ShapeDtypeStruct((1, 1), jnp.float32)),  # contrastive loss
    )(cand_all, gen_vecs, bias_col, idf_row, emb_th, emb_en)
    return scores[:, 0], closs[0, 0]


# --------------------------------------------------------------------------
# Driver (deterministic synthetic parameters / "encoder outputs")
# --------------------------------------------------------------------------
if __name__ == "__main__":
    H = 32            # d_model surrogate (self.model.config.d_model)
    MAX_WORDS = 64    # self.max_words
    SEQ = 16          # padded CHQ length fed to the encoder
    TOP_K = 3         # self.top_k
    N_ANS = 5         # number of filtered answer sentences
    VOCAB = 64

    key = jax.random.PRNGKey(0)
    (k_emb, k_gids, k_qids, k_aids, k_idf, k_th, k_en) = jax.random.split(key, 7)

    # TODO(synk): the pretrained MT5 encoder/decoder, tokenizers, beam-search
    # generation, sparse TF-IDF retrieval and answer-text filtering cannot be
    # reproduced on-device; a deterministic embedding-table lookup stands in
    # for encoder outputs.
    embed_table = 0.1 * jax.random.normal(k_emb, (VOCAB, H), jnp.float32)

    gen_ids = jax.random.randint(k_gids, (MAX_WORDS,), 0, VOCAB)
    q_ids = jax.random.randint(k_qids, (TOP_K, MAX_WORDS), 0, VOCAB)
    a_ids = jax.random.randint(k_aids, (N_ANS, MAX_WORDS), 0, VOCAB)

    gen_len = 20
    q_lens = jnp.array([40, 64, 25], jnp.int32)
    a_lens = jnp.array([30, 64, 10, 50, 22], jnp.int32)

    gen_vecs = embed_table[gen_ids]          # (MAX_WORDS, H)   gen_faq_vec
    question_vecs = embed_table[q_ids]       # (TOP_K, MAX_WORDS, H)
    answer_vecs = embed_table[a_ids]         # (N_ANS, MAX_WORDS, H)
    emb_th = jax.random.normal(k_th, (SEQ, H), jnp.float32)
    emb_en = jax.random.normal(k_en, (SEQ, H), jnp.float32)

    # idf vector over generated-FAQ tokens (zero past its tokenized length),
    # stored lane-major as (1, Lq).
    idf_raw = jnp.abs(jax.random.normal(k_idf, (MAX_WORDS,), jnp.float32))
    idf_row = jnp.where(jnp.arange(MAX_WORDS) < gen_len, idf_raw, 0.0)[None, :]

    # ---- single fused Pallas launch: question + answer scoring + contrastive ----
    cand_banks = jnp.concatenate([question_vecs, answer_vecs], axis=0)   # (8, 64, H)
    cand_lens = jnp.concatenate([q_lens, a_lens], axis=0)                # (8,)
    scores, c_loss = qa_scores_and_contrastive(
        gen_vecs, idf_row, cand_banks, cand_lens, emb_th, emb_en)

    bscores = scores[:TOP_K]       # BERT_SCORES (question matching)
    ascores = scores[TOP_K:]       # answer_similarities

    matched_faq_idx = jnp.argmax(bscores)
    matched_faq_output = 1.0 - bscores[matched_faq_idx]

    cls_vec_loss = jnp.sum(ascores * (1.0 - ascores))
    select_loss = jnp.abs(min(TOP_K, N_ANS) - jnp.sum(ascores))
    num_answer_sentences = TOP_K
    # [::-3] matches the reference implementation verbatim.
    answer_sentences_idx = jnp.argsort(ascores)[-num_answer_sentences:][::-3]

    jax.block_until_ready((scores, bscores, ascores, matched_faq_idx,
                           matched_faq_output, cls_vec_loss, select_loss,
                           answer_sentences_idx, c_loss))
    print("KERNEL_OK")
</pallas_src>

<mosaic_0001>
module attributes {stable_mosaic.version = 11 : i64} {
  func.func @_fused_qa_kernel(%arg0: memref<512x128xf32, #tpu.memory_space<vmem>>, %arg1: memref<64x128xf32, #tpu.memory_space<vmem>>, %arg2: memref<512x1xf32, #tpu.memory_space<vmem>>, %arg3: memref<1x64xf32, #tpu.memory_space<vmem>>, %arg4: memref<16x128xf32, #tpu.memory_space<vmem>>, %arg5: memref<16x128xf32, #tpu.memory_space<vmem>>, %arg6: memref<8x1xf32, #tpu.memory_space<vmem>>, %arg7: memref<1x1xf32, #tpu.memory_space<vmem>>) attributes {dimension_semantics = [], scalar_prefetch = 0 : i64, scratch_operands = 0 : i64, tpu.core_type = #tpu.core_type<tc>} {
    %c0 = arith.constant 0 : index
    %c0_0 = arith.constant 0 : index
    %0 = vector.load %arg1[%c0, %c0_0] : memref<64x128xf32, #tpu.memory_space<vmem>>, vector<64x128xf32>
    %c0_1 = arith.constant 0 : index
    %c0_2 = arith.constant 0 : index
    %1 = vector.load %arg0[%c0_1, %c0_2] : memref<512x128xf32, #tpu.memory_space<vmem>>, vector<512x128xf32>
    %2 = arith.mulf %0, %0 : vector<64x128xf32>
    %cst = arith.constant dense<0.000000e+00> : vector<64xf32>
    %3 = vector.multi_reduction <add>, %2, %cst [1] : vector<64x128xf32> to vector<64xf32>
    %4 = vector.shape_cast %3 : vector<64xf32> to vector<64x1xf32>
    %cst_3 = arith.constant 1.000000e-16 : f32
    %5 = vector.broadcast %cst_3 : f32 to vector<64x1xf32>
    %6 = arith.maximumf %4, %5 : vector<64x1xf32>
    %7 = math.rsqrt %6 : vector<64x1xf32>
    %8 = vector.broadcast %7 : vector<64x1xf32> to vector<64x128xf32>
    %9 = arith.mulf %0, %8 : vector<64x128xf32>
    %10 = arith.mulf %1, %1 : vector<512x128xf32>
    %cst_4 = arith.constant dense<0.000000e+00> : vector<512xf32>
    %11 = vector.multi_reduction <add>, %10, %cst_4 [1] : vector<512x128xf32> to vector<512xf32>
    %12 = vector.shape_cast %11 : vector<512xf32> to vector<512x1xf32>
    %cst_5 = arith.constant 1.000000e-16 : f32
    %13 = vector.broadcast %cst_5 : f32 to vector<512x1xf32>
    %14 = arith.maximumf %12, %13 : vector<512x1xf32>
    %15 = math.rsqrt %14 : vector<512x1xf32>
    %16 = vector.broadcast %15 : vector<512x1xf32> to vector<512x128xf32>
    %17 = arith.mulf %1, %16 : vector<512x128xf32>
    %cst_6 = arith.constant dense<0.000000e+00> : vector<512x64xf32>
    %18 = tpu.matmul %17, %9, %cst_6 {dimension_numbers = #tpu.dot_dimension_numbers<[1], [1], [0], [0], [0, 0, 1, 0], [], []>} : vector<512x128xf32>, vector<64x128xf32>, vector<512x64xf32> -> vector<512x64xf32>
    %c0_7 = arith.constant 0 : index
    %c0_8 = arith.constant 0 : index
    %19 = vector.load %arg2[%c0_7, %c0_8] : memref<512x1xf32, #tpu.memory_space<vmem>>, vector<512x1xf32>
    %20 = vector.broadcast %19 : vector<512x1xf32> to vector<512x64xf32>
    %21 = arith.addf %18, %20 : vector<512x64xf32>
    %22 = vector.shape_cast %21 : vector<512x64xf32> to vector<8x64x64xf32>
    %cst_9 = arith.constant dense<0xFF800000> : vector<8x64xf32>
    %23 = vector.multi_reduction <maximumf>, %22, %cst_9 [1] : vector<8x64x64xf32> to vector<8x64xf32>
    %c0_10 = arith.constant 0 : index
    %c0_11 = arith.constant 0 : index
    %24 = vector.load %arg3[%c0_10, %c0_11] : memref<1x64xf32, #tpu.memory_space<vmem>>, vector<1x64xf32>
    %cst_12 = arith.constant dense<0.000000e+00> : vector<1xf32>
    %25 = vector.multi_reduction <add>, %24, %cst_12 [1] : vector<1x64xf32> to vector<1xf32>
    %26 = vector.shape_cast %25 : vector<1xf32> to vector<1x1xf32>
    %cst_13 = arith.constant 9.99999997E-7 : f32
    %27 = vector.broadcast %cst_13 : f32 to vector<1x1xf32>
    %28 = arith.maximumf %26, %27 : vector<1x1xf32>
    %29 = vector.broadcast %24 : vector<1x64xf32> to vector<8x64xf32>
    %30 = arith.mulf %23, %29 : vector<8x64xf32>
    %cst_14 = arith.constant dense<0.000000e+00> : vector<8xf32>
    %31 = vector.multi_reduction <add>, %30, %cst_14 [1] : vector<8x64xf32> to vector<8xf32>
    %32 = vector.shape_cast %31 : vector<8xf32> to vector<8x1xf32>
    %33 = vector.broadcast %28 : vector<1x1xf32> to vector<8x1xf32>
    %34 = arith.divf %32, %33 : vector<8x1xf32>
    %cst_15 = arith.constant 0.000000e+00 : f32
    %35 = vector.broadcast %cst_15 : f32 to vector<8x1xf32>
    %36 = arith.maximumf %34, %35 : vector<8x1xf32>
    %c0_16 = arith.constant 0 : index
    %c0_17 = arith.constant 0 : index
    %37 = vector.load %arg6[%c0_16, %c0_17] : memref<8x1xf32, #tpu.memory_space<vmem>>, vector<8x1xf32>
    tpu.vector_store %arg6[%c0_16, %c0_17], %36 {strides = array<i32>} : memref<8x1xf32, #tpu.memory_space<vmem>>, vector<8x1xf32>,
    %c0_18 = arith.constant 0 : index
    %c0_19 = arith.constant 0 : index
    %38 = vector.load %arg4[%c0_18, %c0_19] : memref<16x128xf32, #tpu.memory_space<vmem>>, vector<16x128xf32>
    %cst_20 = arith.constant dense<0.000000e+00> : vector<128xf32>
    %39 = vector.multi_reduction <add>, %38, %cst_20 [0] : vector<16x128xf32> to vector<128xf32>
    %40 = vector.shape_cast %39 : vector<128xf32> to vector<1x128xf32>
    %cst_21 = arith.constant 1.600000e+01 : f32
    %41 = vector.broadcast %cst_21 : f32 to vector<1x128xf32>
    %42 = arith.divf %40, %41 : vector<1x128xf32>
    %c0_22 = arith.constant 0 : index
    %c0_23 = arith.constant 0 : index
    %43 = vector.load %arg5[%c0_22, %c0_23] : memref<16x128xf32, #tpu.memory_space<vmem>>, vector<16x128xf32>
    %cst_24 = arith.constant dense<0.000000e+00> : vector<128xf32>
    %44 = vector.multi_reduction <add>, %43, %cst_24 [0] : vector<16x128xf32> to vector<128xf32>
    %45 = vector.shape_cast %44 : vector<128xf32> to vector<1x128xf32>
    %cst_25 = arith.constant 1.600000e+01 : f32
    %46 = vector.broadcast %cst_25 : f32 to vector<1x128xf32>
    %47 = arith.divf %45, %46 : vector<1x128xf32>
    %48 = arith.mulf %42, %47 : vector<1x128xf32>
    %cst_26 = arith.constant dense<0.000000e+00> : vector<1xf32>
    %49 = vector.multi_reduction <add>, %48, %cst_26 [1] : vector<1x128xf32> to vector<1xf32>
    %50 = vector.shape_cast %49 : vector<1xf32> to vector<1x1xf32>
    %51 = arith.mulf %42, %42 : vector<1x128xf32>
    %cst_27 = arith.constant dense<0.000000e+00> : vector<1xf32>
    %52 = vector.multi_reduction <add>, %51, %cst_27 [1] : vector<1x128xf32> to vector<1xf32>
    %53 = vector.shape_cast %52 : vector<1xf32> to vector<1x1xf32>
    %cst_28 = arith.constant 1.000000e-16 : f32
    %54 = vector.broadcast %cst_28 : f32 to vector<1x1xf32>
    %55 = arith.maximumf %53, %54 : vector<1x1xf32>
    %56 = math.rsqrt %55 : vector<1x1xf32>
    %57 = arith.mulf %47, %47 : vector<1x128xf32>
    %cst_29 = arith.constant dense<0.000000e+00> : vector<1xf32>
    %58 = vector.multi_reduction <add>, %57, %cst_29 [1] : vector<1x128xf32> to vector<1xf32>
    %59 = vector.shape_cast %58 : vector<1xf32> to vector<1x1xf32>
    %cst_30 = arith.constant 1.000000e-16 : f32
    %60 = vector.broadcast %cst_30 : f32 to vector<1x1xf32>
    %61 = arith.maximumf %59, %60 : vector<1x1xf32>
    %62 = math.rsqrt %61 : vector<1x1xf32>
    %63 = arith.mulf %50, %56 : vector<1x1xf32>
    %64 = arith.mulf %63, %62 : vector<1x1xf32>
    %cst_31 = arith.constant 1.000000e+00 : f32
    %65 = vector.broadcast %cst_31 : f32 to vector<1x1xf32>
    %66 = arith.subf %65, %64 : vector<1x1xf32>
    %c0_32 = arith.constant 0 : index
    %c0_33 = arith.constant 0 : index
    %67 = vector.load %arg7[%c0_32, %c0_33] : memref<1x1xf32, #tpu.memory_space<vmem>>, vector<1x1xf32>
    tpu.vector_store %arg7[%c0_32, %c0_33], %66 {strides = array<i32>} : memref<1x1xf32, #tpu.memory_space<vmem>>, vector<1x1xf32>,
    return
  }
}

</mosaic_0001>

<llo_original>
// kernel: tpu_custom_call.1
$region0: #{tpu_custom_call.1}
  #allocation0 [shape = 'u32[]', space=smem, size = 0x4, offset = 0x4, fixed_abs, tag = 'smem constant byte address 0x4 - core index']
  #allocation1 [shape = 'u32[144,128]{1,0:T(1,128)}', space=vmem, size = 0x12000, scoped, tag = 'internal scratch']
  %s0 = inlined_call_operand.vmem [shape: f32[512,128], index: 0, kind: input, shape index: {}]
  %s1 = inlined_call_operand.hbm [shape: f32[64,128], index: 1, kind: input, shape index: {}]
  %s2 = inlined_call_operand.vmem [shape: f32[512,1], index: 2, kind: input, shape index: {}]
  %s3 = inlined_call_operand.vmem [shape: f32[1,64], index: 3, kind: input, shape index: {}]
  %s4 = inlined_call_operand.vmem [shape: f32[16,128], index: 4, kind: input, shape index: {}]
  %s5 = inlined_call_operand.hbm [shape: f32[16,128], index: 5, kind: input, shape index: {}]
  %s6 = inlined_call_operand.vmem [shape: f32[8,1], index: 6, kind: output, shape index: {0}]
  %s7 = inlined_call_operand.hbm [shape: f32[1,1], index: 7, kind: output, shape index: {1}]
  %8 = xla_tuple %s6, %s7
  %s9 = sld [smem:[#allocation0]]
  $region50: #{tpu_custom_call.1} parent=0
    _
  %s11 = ssub.s32 1, %s9
  %s12 = scalar_select 0, %s11, %s9
  $region1: #{tpu_custom_call.1} parent=0
    #allocation2 [shape = 'u8[32768]{0}', space=vmem, size = 0x8000, scoped, tag = 'input window, operand 1, single buffered']
    #allocation3 [shape = 's32[1]{0}', space=sflag, size = 0x4, scoped, tag = 'scoped memory for tpu_custom_call.1']
    #allocation4 [shape = 's32[1]{0}', space=sflag, size = 0x4, scoped, tag = 'scoped memory for tpu_custom_call.1']
    #allocation5 [shape = 'u8[8192]{0}', space=vmem, size = 0x2000, scoped, tag = 'input window, operand 5, single buffered']
    #allocation6 [shape = 's32[1]{0}', space=sflag, size = 0x4, scoped, tag = 'scoped memory for tpu_custom_call.1']
    #allocation7 [shape = 'u8[512]{0}', space=vmem, size = 0x400, scoped, tag = 'output window, operand 1, single buffered']
    %13 = vsyncpa [#allocation3], 0
    %14 = vsyncpa [#allocation6], 0
    %15 = vsyncpa [#allocation4], 0
    // Predicated region
    $region2: #{tpu_custom_call.1} parent=1 // pred_check
      _
    $region3: #{tpu_custom_call.1} parent=1 // pred_check_branch
      %17 = sbr.rel (0) target = $region5
    $region4: #{tpu_custom_call.1} parent=1 // pred_region
      _
    $region5: #{tpu_custom_call.1} parent=1 // pred_fallthru
      _
    // Predicated region
    $region6: #{tpu_custom_call.1} parent=1 // pred_check
      _
    $region7: #{tpu_custom_call.1} parent=1 // pred_check_branch
      %19 = sbr.rel (0) target = $region9
    $region8: #{tpu_custom_call.1} parent=1 // pred_region
      %s21 = ssub.s32 1024, 1024
      %22 = vsyncadd [#allocation3], %s21
      %s23 = sshll.u32 [#allocation2], 4
      %s24 = int_to_ptr.vmem [resolvable:$true] %s23
      %29 = dma.hbm_to_vmem [thread:$0]  %s1, 1024, %s24, [#allocation3], 128, 128, 8
    $region9: #{tpu_custom_call.1} parent=1 // pred_fallthru
      _
    // Predicated region
    $region10: #{tpu_custom_call.1} parent=1 // pred_check
      _
    $region11: #{tpu_custom_call.1} parent=1 // pred_check_branch
      %31 = sbr.rel (0) target = $region13
    $region12: #{tpu_custom_call.1} parent=1 // pred_region
      _
    $region13: #{tpu_custom_call.1} parent=1 // pred_fallthru
      _
    // Predicated region
    $region14: #{tpu_custom_call.1} parent=1 // pred_check
      _
    $region15: #{tpu_custom_call.1} parent=1 // pred_check_branch
      %33 = sbr.rel (0) target = $region17
    $region16: #{tpu_custom_call.1} parent=1 // pred_region
      _
    $region17: #{tpu_custom_call.1} parent=1 // pred_fallthru
      _
    // Predicated region
    $region18: #{tpu_custom_call.1} parent=1 // pred_check
      _
    $region19: #{tpu_custom_call.1} parent=1 // pred_check_branch
      %35 = sbr.rel (0) target = $region21
    $region20: #{tpu_custom_call.1} parent=1 // pred_region
      _
    $region21: #{tpu_custom_call.1} parent=1 // pred_fallthru
      _
    // Predicated region
    $region22: #{tpu_custom_call.1} parent=1 // pred_check
      _
    $region23: #{tpu_custom_call.1} parent=1 // pred_check_branch
      %37 = sbr.rel (0) target = $region25
    $region24: #{tpu_custom_call.1} parent=1 // pred_region
      %s39 = ssub.s32 256, 256
      %40 = vsyncadd [#allocation6], %s39
      %s41 = sshll.u32 [#allocation5], 4
      %s42 = int_to_ptr.vmem [resolvable:$true] %s41
      %47 = dma.hbm_to_vmem [thread:$0]  %s5, 256, %s42, [#allocation6], 128, 128, 8
    $region25: #{tpu_custom_call.1} parent=1 // pred_fallthru
      _
    // Predicated region
    $region26: #{tpu_custom_call.1} parent=1 // pred_check
      _
    $region27: #{tpu_custom_call.1} parent=1 // pred_check_branch
      %49 = sbr.rel (0) target = $region29
    $region28: #{tpu_custom_call.1} parent=1 // pred_region
      %50 = dma.done [#allocation3], 1024
    $region29: #{tpu_custom_call.1} parent=1 // pred_fallthru
      _
    // Predicated region
    $region30: #{tpu_custom_call.1} parent=1 // pred_check
      _
    $region31: #{tpu_custom_call.1} parent=1 // pred_check_branch
      %52 = sbr.rel (0) target = $region33
    $region32: #{tpu_custom_call.1} parent=1 // pred_region
      %53 = dma.done [#allocation6], 256
    $region33: #{tpu_custom_call.1} parent=1 // pred_fallthru
      _
    %v54 = vld [vmem:[#allocation2] sm:$0xff]
    %v55 = vld [vmem:[#allocation2 + $0x8] sm:$0xff]
    %v56 = vld [vmem:[#allocation2 + $0x10] sm:$0xff]
    %v57 = vld [vmem:[#allocation2 + $0x18] sm:$0xff]
    %v58 = vld [vmem:[#allocation2 + $0x20] sm:$0xff]
    %v59 = vld [vmem:[#allocation2 + $0x28] sm:$0xff]
    %v60 = vld [vmem:[#allocation2 + $0x30] sm:$0xff]
    %v61 = vld [vmem:[#allocation2 + $0x38] sm:$0xff]
    %v62 = vld [vmem:[%s0] sm:$0xff]
    %v63 = vld [vmem:[%s0 + $0x8] sm:$0xff]
    %v64 = vld [vmem:[%s0 + $0x10] sm:$0xff]
    %v65 = vld [vmem:[%s0 + $0x18] sm:$0xff]
    %v66 = vld [vmem:[%s0 + $0x20] sm:$0xff]
    %v67 = vld [vmem:[%s0 + $0x28] sm:$0xff]
    %v68 = vld [vmem:[%s0 + $0x30] sm:$0xff]
    %v69 = vld [vmem:[%s0 + $0x38] sm:$0xff]
    %v70 = vld [vmem:[%s0 + $0x40] sm:$0xff]
    %v71 = vld [vmem:[%s0 + $0x48] sm:$0xff]
    %v72 = vld [vmem:[%s0 + $0x50] sm:$0xff]
    %v73 = vld [vmem:[%s0 + $0x58] sm:$0xff]
    %v74 = vld [vmem:[%s0 + $0x60] sm:$0xff]
    %v75 = vld [vmem:[%s0 + $0x68] sm:$0xff]
    %v76 = vld [vmem:[%s0 + $0x70] sm:$0xff]
    %v77 = vld [vmem:[%s0 + $0x78] sm:$0xff]
    %v78 = vld [vmem:[%s0 + $0x80] sm:$0xff]
    %v79 = vld [vmem:[%s0 + $0x88] sm:$0xff]
    %v80 = vld [vmem:[%s0 + $0x90] sm:$0xff]
    %v81 = vld [vmem:[%s0 + $0x98] sm:$0xff]
    %v82 = vld [vmem:[%s0 + $0xa0] sm:$0xff]
    %v83 = vld [vmem:[%s0 + $0xa8] sm:$0xff]
    %v84 = vld [vmem:[%s0 + $0xb0] sm:$0xff]
    %v85 = vld [vmem:[%s0 + $0xb8] sm:$0xff]
    %v86 = vld [vmem:[%s0 + $0xc0] sm:$0xff]
    %v87 = vld [vmem:[%s0 + $0xc8] sm:$0xff]
    %v88 = vld [vmem:[%s0 + $0xd0] sm:$0xff]
    %v89 = vld [vmem:[%s0 + $0xd8] sm:$0xff]
    %v90 = vld [vmem:[%s0 + $0xe0] sm:$0xff]
    %v91 = vld [vmem:[%s0 + $0xe8] sm:$0xff]
    %v92 = vld [vmem:[%s0 + $0xf0] sm:$0xff]
    %v93 = vld [vmem:[%s0 + $0xf8] sm:$0xff]
    %v94 = vld [vmem:[%s0 + $0x100] sm:$0xff]
    %v95 = vld [vmem:[%s0 + $0x108] sm:$0xff]
    %v96 = vld [vmem:[%s0 + $0x110] sm:$0xff]
    %v97 = vld [vmem:[%s0 + $0x118] sm:$0xff]
    %v98 = vld [vmem:[%s0 + $0x120] sm:$0xff]
    %v99 = vld [vmem:[%s0 + $0x128] sm:$0xff]
    %v100 = vld [vmem:[%s0 + $0x130] sm:$0xff]
    %v101 = vld [vmem:[%s0 + $0x138] sm:$0xff]
    %v102 = vld [vmem:[%s0 + $0x140] sm:$0xff]
    %v103 = vld [vmem:[%s0 + $0x148] sm:$0xff]
    %v104 = vld [vmem:[%s0 + $0x150] sm:$0xff]
    %v105 = vld [vmem:[%s0 + $0x158] sm:$0xff]
    %v106 = vld [vmem:[%s0 + $0x160] sm:$0xff]
    %v107 = vld [vmem:[%s0 + $0x168] sm:$0xff]
    %v108 = vld [vmem:[%s0 + $0x170] sm:$0xff]
    %v109 = vld [vmem:[%s0 + $0x178] sm:$0xff]
    %v110 = vld [vmem:[%s0 + $0x180] sm:$0xff]
    %v111 = vld [vmem:[%s0 + $0x188] sm:$0xff]
    %v112 = vld [vmem:[%s0 + $0x190] sm:$0xff]
    %v113 = vld [vmem:[%s0 + $0x198] sm:$0xff]
    %v114 = vld [vmem:[%s0 + $0x1a0] sm:$0xff]
    %v115 = vld [vmem:[%s0 + $0x1a8] sm:$0xff]
    %v116 = vld [vmem:[%s0 + $0x1b0] sm:$0xff]
    %v117 = vld [vmem:[%s0 + $0x1b8] sm:$0xff]
    %v118 = vld [vmem:[%s0 + $0x1c0] sm:$0xff]
    %v119 = vld [vmem:[%s0 + $0x1c8] sm:$0xff]
    %v120 = vld [vmem:[%s0 + $0x1d0] sm:$0xff]
    %v121 = vld [vmem:[%s0 + $0x1d8] sm:$0xff]
    %v122 = vld [vmem:[%s0 + $0x1e0] sm:$0xff]
    %v123 = vld [vmem:[%s0 + $0x1e8] sm:$0xff]
    %v124 = vld [vmem:[%s0 + $0x1f0] sm:$0xff]
    %v125 = vld [vmem:[%s0 + $0x1f8] sm:$0xff]
    %v126 = vmul.f32 %v54, %v54
    %v127 = vmul.f32 %v55, %v55
    %v128 = vmul.f32 %v56, %v56
    %v129 = vmul.f32 %v57, %v57
    %v130 = vmul.f32 %v58, %v58
    %v131 = vmul.f32 %v59, %v59
    %v132 = vmul.f32 %v60, %v60
    %v133 = vmul.f32 %v61, %v61
    %134 = vadd.xlane.f32.xlu0 %v126
    %v135 = vpop.xlane.xlu0 %134
    %136 = vadd.xlane.f32.xlu0 %v127
    %v137 = vpop.xlane.xlu0 %136
    %138 = vadd.xlane.f32.xlu0 %v128
    %v139 = vpop.xlane.xlu0 %138
    %140 = vadd.xlane.f32.xlu0 %v129
    %v141 = vpop.xlane.xlu0 %140
    %142 = vadd.xlane.f32.xlu0 %v130
    %v143 = vpop.xlane.xlu0 %142
    %144 = vadd.xlane.f32.xlu0 %v131
    %v145 = vpop.xlane.xlu0 %144
    %146 = vadd.xlane.f32.xlu0 %v132
    %v147 = vpop.xlane.xlu0 %146
    %148 = vadd.xlane.f32.xlu0 %v133
    %v149 = vpop.xlane.xlu0 %148
    %v150 = vmax.f32 %v135, 1e-16
    %v151 = vmax.f32 %v137, 1e-16
    %v152 = vmax.f32 %v139, 1e-16
    %v153 = vmax.f32 %v141, 1e-16
    %v154 = vmax.f32 %v143, 1e-16
    %v155 = vmax.f32 %v145, 1e-16
    %v156 = vmax.f32 %v147, 1e-16
    %v157 = vmax.f32 %v149, 1e-16
    %v158 = vrsqrt.pop %v150
    %v159 = vrsqrt.pop %v151
    %v160 = vrsqrt.pop %v152
    %v161 = vrsqrt.pop %v153
    %v162 = vrsqrt.pop %v154
    %v163 = vrsqrt.pop %v155
    %v164 = vrsqrt.pop %v156
    %v165 = vrsqrt.pop %v157
    %v166 = vmul.f32 %v54, %v158
    %v167 = vmul.f32 %v55, %v159
    %v168 = vmul.f32 %v56, %v160
    %v169 = vmul.f32 %v57, %v161
    %v170 = vmul.f32 %v58, %v162
    %v171 = vmul.f32 %v59, %v163
    %v172 = vmul.f32 %v60, %v164
    %v173 = vmul.f32 %v61, %v165
    %v174 = vmul.f32 %v62, %v62
    %v175 = vmul.f32 %v63, %v63
    %v176 = vmul.f32 %v64, %v64
    %v177 = vmul.f32 %v65, %v65
    %v178 = vmul.f32 %v66, %v66
    %v179 = vmul.f32 %v67, %v67
    %v180 = vmul.f32 %v68, %v68
    %v181 = vmul.f32 %v69, %v69
    %v182 = vmul.f32 %v70, %v70
    %v183 = vmul.f32 %v71, %v71
    %v184 = vmul.f32 %v72, %v72
    %v185 = vmul.f32 %v73, %v73
    %v186 = vmul.f32 %v74, %v74
    %v187 = vmul.f32 %v75, %v75
    %v188 = vmul.f32 %v76, %v76
    %v189 = vmul.f32 %v77, %v77
    %v190 = vmul.f32 %v78, %v78
    %v191 = vmul.f32 %v79, %v79
    %v192 = vmul.f32 %v80, %v80
    %v193 = vmul.f32 %v81, %v81
    %v194 = vmul.f32 %v82, %v82
    %v195 = vmul.f32 %v83, %v83
    %v196 = vmul.f32 %v84, %v84
    %v197 = vmul.f32 %v85, %v85
    %v198 = vmul.f32 %v86, %v86
    %v199 = vmul.f32 %v87, %v87
    %v200 = vmul.f32 %v88, %v88
    %v201 = vmul.f32 %v89, %v89
    %v202 = vmul.f32 %v90, %v90
    %v203 = vmul.f32 %v91, %v91
    %v204 = vmul.f32 %v92, %v92
    %v205 = vmul.f32 %v93, %v93
    %v206 = vmul.f32 %v94, %v94
    %v207 = vmul.f32 %v95, %v95
    %v208 = vmul.f32 %v96, %v96
    %v209 = vmul.f32 %v97, %v97
    %v210 = vmul.f32 %v98, %v98
    %v211 = vmul.f32 %v99, %v99
    %v212 = vmul.f32 %v100, %v100
    %v213 = vmul.f32 %v101, %v101
    %v214 = vmul.f32 %v102, %v102
    %v215 = vmul.f32 %v103, %v103
    %v216 = vmul.f32 %v104, %v104
    %v217 = vmul.f32 %v105, %v105
    %v218 = vmul.f32 %v106, %v106
    %v219 = vmul.f32 %v107, %v107
    %v220 = vmul.f32 %v108, %v108
    %v221 = vmul.f32 %v109, %v109
    %v222 = vmul.f32 %v110, %v110
    %v223 = vmul.f32 %v111, %v111
    %v224 = vmul.f32 %v112, %v112
    %v225 = vmul.f32 %v113, %v113
    %v226 = vmul.f32 %v114, %v114
    %v227 = vmul.f32 %v115, %v115
    %v228 = vmul.f32 %v116, %v116
    %v229 = vmul.f32 %v117, %v117
    %v230 = vmul.f32 %v118, %v118
    %v231 = vmul.f32 %v119, %v119
    %v232 = vmul.f32 %v120, %v120
    %v233 = vmul.f32 %v121, %v121
    %v234 = vmul.f32 %v122, %v122
    %v235 = vmul.f32 %v123, %v123
    %v236 = vmul.f32 %v124, %v124
    %v237 = vmul.f32 %v125, %v125
    %238 = vadd.xlane.f32.xlu0 %v174
    %v239 = vpop.xlane.xlu0 %238
    %240 = vadd.xlane.f32.xlu0 %v175
    %v241 = vpop.xlane.xlu0 %240
    %242 = vadd.xlane.f32.xlu0 %v176
    %v243 = vpop.xlane.xlu0 %242
    %244 = vadd.xlane.f32.xlu0 %v177
    %v245 = vpop.xlane.xlu0 %244
    %246 = vadd.xlane.f32.xlu0 %v178
    %v247 = vpop.xlane.xlu0 %246
    %248 = vadd.xlane.f32.xlu0 %v179
    %v249 = vpop.xlane.xlu0 %248
    %250 = vadd.xlane.f32.xlu0 %v180
    %v251 = vpop.xlane.xlu0 %250
    %252 = vadd.xlane.f32.xlu0 %v181
    %v253 = vpop.xlane.xlu0 %252
    %254 = vadd.xlane.f32.xlu0 %v182
    %v255 = vpop.xlane.xlu0 %254
    %256 = vadd.xlane.f32.xlu0 %v183
    %v257 = vpop.xlane.xlu0 %256
    %258 = vadd.xlane.f32.xlu0 %v184
    %v259 = vpop.xlane.xlu0 %258
    %260 = vadd.xlane.f32.xlu0 %v185
    %v261 = vpop.xlane.xlu0 %260
    %262 = vadd.xlane.f32.xlu0 %v186
    %v263 = vpop.xlane.xlu0 %262
    %264 = vadd.xlane.f32.xlu0 %v187
    %v265 = vpop.xlane.xlu0 %264
    %266 = vadd.xlane.f32.xlu0 %v188
    %v267 = vpop.xlane.xlu0 %266
    %268 = vadd.xlane.f32.xlu0 %v189
    %v269 = vpop.xlane.xlu0 %268
    %270 = vadd.xlane.f32.xlu0 %v190
    %v271 = vpop.xlane.xlu0 %270
    %272 = vadd.xlane.f32.xlu0 %v191
    %v273 = vpop.xlane.xlu0 %272
    %274 = vadd.xlane.f32.xlu0 %v192
    %v275 = vpop.xlane.xlu0 %274
    %276 = vadd.xlane.f32.xlu0 %v193
    %v277 = vpop.xlane.xlu0 %276
    %278 = vadd.xlane.f32.xlu0 %v194
    %v279 = vpop.xlane.xlu0 %278
    %280 = vadd.xlane.f32.xlu0 %v195
    %v281 = vpop.xlane.xlu0 %280
    %282 = vadd.xlane.f32.xlu0 %v196
    %v283 = vpop.xlane.xlu0 %282
    %284 = vadd.xlane.f32.xlu0 %v197
    %v285 = vpop.xlane.xlu0 %284
    %286 = vadd.xlane.f32.xlu0 %v198
    %v287 = vpop.xlane.xlu0 %286
    %288 = vadd.xlane.f32.xlu0 %v199
    %v289 = vpop.xlane.xlu0 %288
    %290 = vadd.xlane.f32.xlu0 %v200
    %v291 = vpop.xlane.xlu0 %290
    %292 = vadd.xlane.f32.xlu0 %v201
    %v293 = vpop.xlane.xlu0 %292
    %294 = vadd.xlane.f32.xlu0 %v202
    %v295 = vpop.xlane.xlu0 %294
    %296 = vadd.xlane.f32.xlu0 %v203
    %v297 = vpop.xlane.xlu0 %296
    %298 = vadd.xlane.f32.xlu0 %v204
    %v299 = vpop.xlane.xlu0 %298
    %300 = vadd.xlane.f32.xlu0 %v205
    %v301 = vpop.xlane.xlu0 %300
    %302 = vadd.xlane.f32.xlu0 %v206
    %v303 = vpop.xlane.xlu0 %302
    %304 = vadd.xlane.f32.xlu0 %v207
    %v305 = vpop.xlane.xlu0 %304
    %306 = vadd.xlane.f32.xlu0 %v208
    %v307 = vpop.xlane.xlu0 %306
    %308 = vadd.xlane.f32.xlu0 %v209
    %v309 = vpop.xlane.xlu0 %308
    %310 = vadd.xlane.f32.xlu0 %v210
    %v311 = vpop.xlane.xlu0 %310
    %312 = vadd.xlane.f32.xlu0 %v211
    %v313 = vpop.xlane.xlu0 %312
    %314 = vadd.xlane.f32.xlu0 %v212
    %v315 = vpop.xlane.xlu0 %314
    %316 = vadd.xlane.f32.xlu0 %v213
    %v317 = vpop.xlane.xlu0 %316
    %318 = vadd.xlane.f32.xlu0 %v214
    %v319 = vpop.xlane.xlu0 %318
    %320 = vadd.xlane.f32.xlu0 %v215
    %v321 = vpop.xlane.xlu0 %320
    %322 = vadd.xlane.f32.xlu0 %v216
    %v323 = vpop.xlane.xlu0 %322
    %324 = vadd.xlane.f32.xlu0 %v217
    %v325 = vpop.xlane.xlu0 %324
    %326 = vadd.xlane.f32.xlu0 %v218
    %v327 = vpop.xlane.xlu0 %326
    %328 = vadd.xlane.f32.xlu0 %v219
    %v329 = vpop.xlane.xlu0 %328
    %330 = vadd.xlane.f32.xlu0 %v220
    %v331 = vpop.xlane.xlu0 %330
    %332 = vadd.xlane.f32.xlu0 %v221
    %v333 = vpop.xlane.xlu0 %332
    %334 = vadd.xlane.f32.xlu0 %v222
    %v335 = vpop.xlane.xlu0 %334
    %336 = vadd.xlane.f32.xlu0 %v223
    %v337 = vpop.xlane.xlu0 %336
    %338 = vadd.xlane.f32.xlu0 %v224
    %v339 = vpop.xlane.xlu0 %338
    %340 = vadd.xlane.f32.xlu0 %v225
    %v341 = vpop.xlane.xlu0 %340
    %342 = vadd.xlane.f32.xlu0 %v226
    %v343 = vpop.xlane.xlu0 %342
    %344 = vadd.xlane.f32.xlu0 %v227
    %v345 = vpop.xlane.xlu0 %344
    %346 = vadd.xlane.f32.xlu0 %v228
    %v347 = vpop.xlane.xlu0 %346
    %348 = vadd.xlane.f32.xlu0 %v229
    %v349 = vpop.xlane.xlu0 %348
    %350 = vadd.xlane.f32.xlu0 %v230
    %v351 = vpop.xlane.xlu0 %350
    %352 = vadd.xlane.f32.xlu0 %v231
    %v353 = vpop.xlane.xlu0 %352
    %354 = vadd.xlane.f32.xlu0 %v232
    %v355 = vpop.xlane.xlu0 %354
    %356 = vadd.xlane.f32.xlu0 %v233
    %v357 = vpop.xlane.xlu0 %356
    %358 = vadd.xlane.f32.xlu0 %v234
    %v359 = vpop.xlane.xlu0 %358
    %360 = vadd.xlane.f32.xlu0 %v235
    %v361 = vpop.xlane.xlu0 %360
    %362 = vadd.xlane.f32.xlu0 %v236
    %v363 = vpop.xlane.xlu0 %362
    %364 = vadd.xlane.f32.xlu0 %v237
    %v365 = vpop.xlane.xlu0 %364
    %v366 = vmax.f32 %v239, 1e-16
    %v367 = vmax.f32 %v241, 1e-16
    %v368 = vmax.f32 %v243, 1e-16
    %v369 = vmax.f32 %v245, 1e-16
    %v370 = vmax.f32 %v247, 1e-16
    %v371 = vmax.f32 %v249, 1e-16
    %v372 = vmax.f32 %v251, 1e-16
    %v373 = vmax.f32 %v253, 1e-16
    %v374 = vmax.f32 %v255, 1e-16
    %v375 = vmax.f32 %v257, 1e-16
    %v376 = vmax.f32 %v259, 1e-16
    %v377 = vmax.f32 %v261, 1e-16
    %v378 = vmax.f32 %v263, 1e-16
    %v379 = vmax.f32 %v265, 1e-16
    %v380 = vmax.f32 %v267, 1e-16
    %v381 = vmax.f32 %v269, 1e-16
    %v382 = vmax.f32 %v271, 1e-16
    %v383 = vmax.f32 %v273, 1e-16
    %v384 = vmax.f32 %v275, 1e-16
    %v385 = vmax.f32 %v277, 1e-16
    %v386 = vmax.f32 %v279, 1e-16
    %v387 = vmax.f32 %v281, 1e-16
    %v388 = vmax.f32 %v283, 1e-16
    %v389 = vmax.f32 %v285, 1e-16
    %v390 = vmax.f32 %v287, 1e-16
    %v391 = vmax.f32 %v289, 1e-16
    %v392 = vmax.f32 %v291, 1e-16
    %v393 = vmax.f32 %v293, 1e-16
    %v394 = vmax.f32 %v295, 1e-16
    %v395 = vmax.f32 %v297, 1e-16
    %v396 = vmax.f32 %v299, 1e-16
    %v397 = vmax.f32 %v301, 1e-16
    %v398 = vmax.f32 %v303, 1e-16
    %v399 = vmax.f32 %v305, 1e-16
    %v400 = vmax.f32 %v307, 1e-16
    %v401 = vmax.f32 %v309, 1e-16
    %v402 = vmax.f32 %v311, 1e-16
    %v403 = vmax.f32 %v313, 1e-16
    %v404 = vmax.f32 %v315, 1e-16
    %v405 = vmax.f32 %v317, 1e-16
    %v406 = vmax.f32 %v319, 1e-16
    %v407 = vmax.f32 %v321, 1e-16
    %v408 = vmax.f32 %v323, 1e-16
    %v409 = vmax.f32 %v325, 1e-16
    %v410 = vmax.f32 %v327, 1e-16
    %v411 = vmax.f32 %v329, 1e-16
    %v412 = vmax.f32 %v331, 1e-16
    %v413 = vmax.f32 %v333, 1e-16
    %v414 = vmax.f32 %v335, 1e-16
    %v415 = vmax.f32 %v337, 1e-16
    %v416 = vmax.f32 %v339, 1e-16
    %v417 = vmax.f32 %v341, 1e-16
    %v418 = vmax.f32 %v343, 1e-16
    %v419 = vmax.f32 %v345, 1e-16
    %v420 = vmax.f32 %v347, 1e-16
    %v421 = vmax.f32 %v349, 1e-16
    %v422 = vmax.f32 %v351, 1e-16
    %v423 = vmax.f32 %v353, 1e-16
    %v424 = vmax.f32 %v355, 1e-16
    %v425 = vmax.f32 %v357, 1e-16
    %v426 = vmax.f32 %v359, 1e-16
    %v427 = vmax.f32 %v361, 1e-16
    %v428 = vmax.f32 %v363, 1e-16
    %v429 = vmax.f32 %v365, 1e-16
    %v430 = vrsqrt.pop %v366
    %v431 = vrsqrt.pop %v367
    %v432 = vrsqrt.pop %v368
    %v433 = vrsqrt.pop %v369
    %v434 = vrsqrt.pop %v370
    %v435 = vrsqrt.pop %v371
    %v436 = vrsqrt.pop %v372
    %v437 = vrsqrt.pop %v373
    %v438 = vrsqrt.pop %v374
    %v439 = vrsqrt.pop %v375
    %v440 = vrsqrt.pop %v376
    %v441 = vrsqrt.pop %v377
    %v442 = vrsqrt.pop %v378
    %v443 = vrsqrt.pop %v379
    %v444 = vrsqrt.pop %v380
    %v445 = vrsqrt.pop %v381
    %v446 = vrsqrt.pop %v382
    %v447 = vrsqrt.pop %v383
    %v448 = vrsqrt.pop %v384
    %v449 = vrsqrt.pop %v385
    %v450 = vrsqrt.pop %v386
    %v451 = vrsqrt.pop %v387
    %v452 = vrsqrt.pop %v388
    %v453 = vrsqrt.pop %v389
    %v454 = vrsqrt.pop %v390
    %v455 = vrsqrt.pop %v391
    %v456 = vrsqrt.pop %v392
    %v457 = vrsqrt.pop %v393
    %v458 = vrsqrt.pop %v394
    %v459 = vrsqrt.pop %v395
    %v460 = vrsqrt.pop %v396
    %v461 = vrsqrt.pop %v397
    %v462 = vrsqrt.pop %v398
    %v463 = vrsqrt.pop %v399
    %v464 = vrsqrt.pop %v400
    %v465 = vrsqrt.pop %v401
    %v466 = vrsqrt.pop %v402
    %v467 = vrsqrt.pop %v403
    %v468 = vrsqrt.pop %v404
    %v469 = vrsqrt.pop %v405
    %v470 = vrsqrt.pop %v406
    %v471 = vrsqrt.pop %v407
    %v472 = vrsqrt.pop %v408
    %v473 = vrsqrt.pop %v409
    %v474 = vrsqrt.pop %v410
    %v475 = vrsqrt.pop %v411
    %v476 = vrsqrt.pop %v412
    %v477 = vrsqrt.pop %v413
    %v478 = vrsqrt.pop %v414
    %v479 = vrsqrt.pop %v415
    %v480 = vrsqrt.pop %v416
    %v481 = vrsqrt.pop %v417
    %v482 = vrsqrt.pop %v418
    %v483 = vrsqrt.pop %v419
    %v484 = vrsqrt.pop %v420
    %v485 = vrsqrt.pop %v421
    %v486 = vrsqrt.pop %v422
    %v487 = vrsqrt.pop %v423
    %v488 = vrsqrt.pop %v424
    %v489 = vrsqrt.pop %v425
    %v490 = vrsqrt.pop %v426
    %v491 = vrsqrt.pop %v427
    %v492 = vrsqrt.pop %v428
    %v493 = vrsqrt.pop %v429
    %v494 = vmul.f32 %v62, %v430
    %v495 = vmul.f32 %v63, %v431
    %v496 = vmul.f32 %v64, %v432
    %v497 = vmul.f32 %v65, %v433
    %v498 = vmul.f32 %v66, %v434
    %v499 = vmul.f32 %v67, %v435
    %v500 = vmul.f32 %v68, %v436
    %v501 = vmul.f32 %v69, %v437
    %v502 = vmul.f32 %v70, %v438
    %v503 = vmul.f32 %v71, %v439
    %v504 = vmul.f32 %v72, %v440
    %v505 = vmul.f32 %v73, %v441
    %v506 = vmul.f32 %v74, %v442
    %v507 = vmul.f32 %v75, %v443
    %v508 = vmul.f32 %v76, %v444
    %v509 = vmul.f32 %v77, %v445
    %v510 = vmul.f32 %v78, %v446
    %v511 = vmul.f32 %v79, %v447
    %v512 = vmul.f32 %v80, %v448
    %v513 = vmul.f32 %v81, %v449
    %v514 = vmul.f32 %v82, %v450
    %v515 = vmul.f32 %v83, %v451
    %v516 = vmul.f32 %v84, %v452
    %v517 = vmul.f32 %v85, %v453
    %v518 = vmul.f32 %v86, %v454
    %v519 = vmul.f32 %v87, %v455
    %v520 = vmul.f32 %v88, %v456
    %v521 = vmul.f32 %v89, %v457
    %v522 = vmul.f32 %v90, %v458
    %v523 = vmul.f32 %v91, %v459
    %v524 = vmul.f32 %v92, %v460
    %v525 = vmul.f32 %v93, %v461
    %v526 = vmul.f32 %v94, %v462
    %v527 = vmul.f32 %v95, %v463
    %v528 = vmul.f32 %v96, %v464
    %v529 = vmul.f32 %v97, %v465
    %v530 = vmul.f32 %v98, %v466
    %v531 = vmul.f32 %v99, %v467
    %v532 = vmul.f32 %v100, %v468
    %v533 = vmul.f32 %v101, %v469
    %v534 = vmul.f32 %v102, %v470
    %v535 = vmul.f32 %v103, %v471
    %v536 = vmul.f32 %v104, %v472
    %v537 = vmul.f32 %v105, %v473
    %v538 = vmul.f32 %v106, %v474
    %v539 = vmul.f32 %v107, %v475
    %v540 = vmul.f32 %v108, %v476
    %v541 = vmul.f32 %v109, %v477
    %v542 = vmul.f32 %v110, %v478
    %v543 = vmul.f32 %v111, %v479
    %v544 = vmul.f32 %v112, %v480
    %v545 = vmul.f32 %v113, %v481
    %v546 = vmul.f32 %v114, %v482
    %v547 = vmul.f32 %v115, %v483
    %v548 = vmul.f32 %v116, %v484
    %v549 = vmul.f32 %v117, %v485
    %v550 = vmul.f32 %v118, %v486
    %v551 = vmul.f32 %v119, %v487
    %v552 = vmul.f32 %v120, %v488
    %v553 = vmul.f32 %v121, %v489
    %v554 = vmul.f32 %v122, %v490
    %v555 = vmul.f32 %v123, %v491
    %v556 = vmul.f32 %v124, %v492
    %v557 = vmul.f32 %v125, %v493
    %v558 = vld [vmem:[%s2] sm:$0xff]
    %v559 = vld [vmem:[%s2 + $0x8] sm:$0xff]
    %v560 = vld [vmem:[%s2 + $0x10] sm:$0xff]
    %v561 = vld [vmem:[%s2 + $0x18] sm:$0xff]
    %v562 = vld [vmem:[%s2 + $0x20] sm:$0xff]
    %v563 = vld [vmem:[%s2 + $0x28] sm:$0xff]
    %v564 = vld [vmem:[%s2 + $0x30] sm:$0xff]
    %v565 = vld [vmem:[%s2 + $0x38] sm:$0xff]
    %v566 = vld [vmem:[%s2 + $0x40] sm:$0xff]
    %v567 = vld [vmem:[%s2 + $0x48] sm:$0xff]
    %v568 = vld [vmem:[%s2 + $0x50] sm:$0xff]
    %v569 = vld [vmem:[%s2 + $0x58] sm:$0xff]
    %v570 = vld [vmem:[%s2 + $0x60] sm:$0xff]
    %v571 = vld [vmem:[%s2 + $0x68] sm:$0xff]
    %v572 = vld [vmem:[%s2 + $0x70] sm:$0xff]
    %v573 = vld [vmem:[%s2 + $0x78] sm:$0xff]
    %v574 = vld [vmem:[%s2 + $0x80] sm:$0xff]
    %v575 = vld [vmem:[%s2 + $0x88] sm:$0xff]
    %v576 = vld [vmem:[%s2 + $0x90] sm:$0xff]
    %v577 = vld [vmem:[%s2 + $0x98] sm:$0xff]
    %v578 = vld [vmem:[%s2 + $0xa0] sm:$0xff]
    %v579 = vld [vmem:[%s2 + $0xa8] sm:$0xff]
    %v580 = vld [vmem:[%s2 + $0xb0] sm:$0xff]
    %v581 = vld [vmem:[%s2 + $0xb8] sm:$0xff]
    %v582 = vld [vmem:[%s2 + $0xc0] sm:$0xff]
    %v583 = vld [vmem:[%s2 + $0xc8] sm:$0xff]
    %v584 = vld [vmem:[%s2 + $0xd0] sm:$0xff]
    %v585 = vld [vmem:[%s2 + $0xd8] sm:$0xff]
    %v586 = vld [vmem:[%s2 + $0xe0] sm:$0xff]
    %v587 = vld [vmem:[%s2 + $0xe8] sm:$0xff]
    %v588 = vld [vmem:[%s2 + $0xf0] sm:$0xff]
    %v589 = vld [vmem:[%s2 + $0xf8] sm:$0xff]
    %v590 = vld [vmem:[%s2 + $0x100] sm:$0xff]
    %v591 = vld [vmem:[%s2 + $0x108] sm:$0xff]
    %v592 = vld [vmem:[%s2 + $0x110] sm:$0xff]
    %v593 = vld [vmem:[%s2 + $0x118] sm:$0xff]
    %v594 = vld [vmem:[%s2 + $0x120] sm:$0xff]
    %v595 = vld [vmem:[%s2 + $0x128] sm:$0xff]
    %v596 = vld [vmem:[%s2 + $0x130] sm:$0xff]
    %v597 = vld [vmem:[%s2 + $0x138] sm:$0xff]
    %v598 = vld [vmem:[%s2 + $0x140] sm:$0xff]
    %v599 = vld [vmem:[%s2 + $0x148] sm:$0xff]
    %v600 = vld [vmem:[%s2 + $0x150] sm:$0xff]
    %v601 = vld [vmem:[%s2 + $0x158] sm:$0xff]
    %v602 = vld [vmem:[%s2 + $0x160] sm:$0xff]
    %v603 = vld [vmem:[%s2 + $0x168] sm:$0xff]
    %v604 = vld [vmem:[%s2 + $0x170] sm:$0xff]
    %v605 = vld [vmem:[%s2 + $0x178] sm:$0xff]
    %v606 = vld [vmem:[%s2 + $0x180] sm:$0xff]
    %v607 = vld [vmem:[%s2 + $0x188] sm:$0xff]
    %v608 = vld [vmem:[%s2 + $0x190] sm:$0xff]
    %v609 = vld [vmem:[%s2 + $0x198] sm:$0xff]
    %v610 = vld [vmem:[%s2 + $0x1a0] sm:$0xff]
    %v611 = vld [vmem:[%s2 + $0x1a8] sm:$0xff]
    %v612 = vld [vmem:[%s2 + $0x1b0] sm:$0xff]
    %v613 = vld [vmem:[%s2 + $0x1b8] sm:$0xff]
    %v614 = vld [vmem:[%s2 + $0x1c0] sm:$0xff]
    %v615 = vld [vmem:[%s2 + $0x1c8] sm:$0xff]
    %v616 = vld [vmem:[%s2 + $0x1d0] sm:$0xff]
    %v617 = vld [vmem:[%s2 + $0x1d8] sm:$0xff]
    %v618 = vld [vmem:[%s2 + $0x1e0] sm:$0xff]
    %v619 = vld [vmem:[%s2 + $0x1e8] sm:$0xff]
    %v620 = vld [vmem:[%s2 + $0x1f0] sm:$0xff]
    %v621 = vld [vmem:[%s2 + $0x1f8] sm:$0xff]
    %623 = vset.pattern.permute.xlu0 0
    %624 = vperm.xlu0 %623, %v558
    %v625 = vpop.permute.xlu0 %624
    %628 = vset.pattern.permute.xlu0 0
    %629 = vperm.xlu0 %628, %v559
    %v630 = vpop.permute.xlu0 %629
    %633 = vset.pattern.permute.xlu0 0
    %634 = vperm.xlu0 %633, %v560
    %v635 = vpop.permute.xlu0 %634
    %638 = vset.pattern.permute.xlu0 0
    %639 = vperm.xlu0 %638, %v561
    %v640 = vpop.permute.xlu0 %639
    %643 = vset.pattern.permute.xlu0 0
    %644 = vperm.xlu0 %643, %v562
    %v645 = vpop.permute.xlu0 %644
    %648 = vset.pattern.permute.xlu0 0
    %649 = vperm.xlu0 %648, %v563
    %v650 = vpop.permute.xlu0 %649
    %653 = vset.pattern.permute.xlu0 0
    %654 = vperm.xlu0 %653, %v564
    %v655 = vpop.permute.xlu0 %654
    %658 = vset.pattern.permute.xlu0 0
    %659 = vperm.xlu0 %658, %v565
    %v660 = vpop.permute.xlu0 %659
    %663 = vset.pattern.permute.xlu0 0
    %664 = vperm.xlu0 %663, %v566
    %v665 = vpop.permute.xlu0 %664
    %668 = vset.pattern.permute.xlu0 0
    %669 = vperm.xlu0 %668, %v567
    %v670 = vpop.permute.xlu0 %669
    %673 = vset.pattern.permute.xlu0 0
    %674 = vperm.xlu0 %673, %v568
    %v675 = vpop.permute.xlu0 %674
    %678 = vset.pattern.permute.xlu0 0
    %679 = vperm.xlu0 %678, %v569
    %v680 = vpop.permute.xlu0 %679
    %683 = vset.pattern.permute.xlu0 0
    %684 = vperm.xlu0 %683, %v570
    %v685 = vpop.permute.xlu0 %684
    %688 = vset.pattern.permute.xlu0 0
    %689 = vperm.xlu0 %688, %v571
    %v690 = vpop.permute.xlu0 %689
    %693 = vset.pattern.permute.xlu0 0
    %694 = vperm.xlu0 %693, %v572
    %v695 = vpop.permute.xlu0 %694
    %698 = vset.pattern.permute.xlu0 0
    %699 = vperm.xlu0 %698, %v573
    %v700 = vpop.permute.xlu0 %699
    %703 = vset.pattern.permute.xlu0 0
    %704 = vperm.xlu0 %703, %v574
    %v705 = vpop.permute.xlu0 %704
    %708 = vset.pattern.permute.xlu0 0
    %709 = vperm.xlu0 %708, %v575
    %v710 = vpop.permute.xlu0 %709
    %713 = vset.pattern.permute.xlu0 0
    %714 = vperm.xlu0 %713, %v576
    %v715 = vpop.permute.xlu0 %714
    %718 = vset.pattern.permute.xlu0 0
    %719 = vperm.xlu0 %718, %v577
    %v720 = vpop.permute.xlu0 %719
    %723 = vset.pattern.permute.xlu0 0
    %724 = vperm.xlu0 %723, %v578
    %v725 = vpop.permute.xlu0 %724
    %728 = vset.pattern.permute.xlu0 0
    %729 = vperm.xlu0 %728, %v579
    %v730 = vpop.permute.xlu0 %729
    %733 = vset.pattern.permute.xlu0 0
    %734 = vperm.xlu0 %733, %v580
    %v735 = vpop.permute.xlu0 %734
    %738 = vset.pattern.permute.xlu0 0
    %739 = vperm.xlu0 %738, %v581
    %v740 = vpop.permute.xlu0 %739
    %743 = vset.pattern.permute.xlu0 0
    %744 = vperm.xlu0 %743, %v582
    %v745 = vpop.permute.xlu0 %744
    %748 = vset.pattern.permute.xlu0 0
    %749 = vperm.xlu0 %748, %v583
    %v750 = vpop.permute.xlu0 %749
    %753 = vset.pattern.permute.xlu0 0
    %754 = vperm.xlu0 %753, %v584
    %v755 = vpop.permute.xlu0 %754
    %758 = vset.pattern.permute.xlu0 0
    %759 = vperm.xlu0 %758, %v585
    %v760 = vpop.permute.xlu0 %759
    %763 = vset.pattern.permute.xlu0 0
    %764 = vperm.xlu0 %763, %v586
    %v765 = vpop.permute.xlu0 %764
    %768 = vset.pattern.permute.xlu0 0
    %769 = vperm.xlu0 %768, %v587
    %v770 = vpop.permute.xlu0 %769
    %773 = vset.pattern.permute.xlu0 0
    %774 = vperm.xlu0 %773, %v588
    %v775 = vpop.permute.xlu0 %774
    %778 = vset.pattern.permute.xlu0 0
    %779 = vperm.xlu0 %778, %v589
    %v780 = vpop.permute.xlu0 %779
    %783 = vset.pattern.permute.xlu0 0
    %784 = vperm.xlu0 %783, %v590
    %v785 = vpop.permute.xlu0 %784
    %788 = vset.pattern.permute.xlu0 0
    %789 = vperm.xlu0 %788, %v591
    %v790 = vpop.permute.xlu0 %789
    %793 = vset.pattern.permute.xlu0 0
    %794 = vperm.xlu0 %793, %v592
    %v795 = vpop.permute.xlu0 %794
    %798 = vset.pattern.permute.xlu0 0
    %799 = vperm.xlu0 %798, %v593
    %v800 = vpop.permute.xlu0 %799
    %803 = vset.pattern.permute.xlu0 0
    %804 = vperm.xlu0 %803, %v594
    %v805 = vpop.permute.xlu0 %804
    %808 = vset.pattern.permute.xlu0 0
    %809 = vperm.xlu0 %808, %v595
    %v810 = vpop.permute.xlu0 %809
    %813 = vset.pattern.permute.xlu0 0
    %814 = vperm.xlu0 %813, %v596
    %v815 = vpop.permute.xlu0 %814
    %818 = vset.pattern.permute.xlu0 0
    %819 = vperm.xlu0 %818, %v597
    %v820 = vpop.permute.xlu0 %819
    %823 = vset.pattern.permute.xlu0 0
    %824 = vperm.xlu0 %823, %v598
    %v825 = vpop.permute.xlu0 %824
    %828 = vset.pattern.permute.xlu0 0
    %829 = vperm.xlu0 %828, %v599
    %v830 = vpop.permute.xlu0 %829
    %833 = vset.pattern.permute.xlu0 0
    %834 = vperm.xlu0 %833, %v600
    %v835 = vpop.permute.xlu0 %834
    %838 = vset.pattern.permute.xlu0 0
    %839 = vperm.xlu0 %838, %v601
    %v840 = vpop.permute.xlu0 %839
    %843 = vset.pattern.permute.xlu0 0
    %844 = vperm.xlu0 %843, %v602
    %v845 = vpop.permute.xlu0 %844
    %848 = vset.pattern.permute.xlu0 0
    %849 = vperm.xlu0 %848, %v603
    %v850 = vpop.permute.xlu0 %849
    %853 = vset.pattern.permute.xlu0 0
    %854 = vperm.xlu0 %853, %v604
    %v855 = vpop.permute.xlu0 %854
    %858 = vset.pattern.permute.xlu0 0
    %859 = vperm.xlu0 %858, %v605
    %v860 = vpop.permute.xlu0 %859
    %863 = vset.pattern.permute.xlu0 0
    %864 = vperm.xlu0 %863, %v606
    %v865 = vpop.permute.xlu0 %864
    %868 = vset.pattern.permute.xlu0 0
    %869 = vperm.xlu0 %868, %v607
    %v870 = vpop.permute.xlu0 %869
    %873 = vset.pattern.permute.xlu0 0
    %874 = vperm.xlu0 %873, %v608
    %v875 = vpop.permute.xlu0 %874
    %878 = vset.pattern.permute.xlu0 0
    %879 = vperm.xlu0 %878, %v609
    %v880 = vpop.permute.xlu0 %879
    %883 = vset.pattern.permute.xlu0 0
    %884 = vperm.xlu0 %883, %v610
    %v885 = vpop.permute.xlu0 %884
    %888 = vset.pattern.permute.xlu0 0
    %889 = vperm.xlu0 %888, %v611
    %v890 = vpop.permute.xlu0 %889
    %893 = vset.pattern.permute.xlu0 0
    %894 = vperm.xlu0 %893, %v612
    %v895 = vpop.permute.xlu0 %894
    %898 = vset.pattern.permute.xlu0 0
    %899 = vperm.xlu0 %898, %v613
    %v900 = vpop.permute.xlu0 %899
    %903 = vset.pattern.permute.xlu0 0
    %904 = vperm.xlu0 %903, %v614
    %v905 = vpop.permute.xlu0 %904
    %908 = vset.pattern.permute.xlu0 0
    %909 = vperm.xlu0 %908, %v615
    %v910 = vpop.permute.xlu0 %909
    %913 = vset.pattern.permute.xlu0 0
    %914 = vperm.xlu0 %913, %v616
    %v915 = vpop.permute.xlu0 %914
    %918 = vset.pattern.permute.xlu0 0
    %919 = vperm.xlu0 %918, %v617
    %v920 = vpop.permute.xlu0 %919
    %923 = vset.pattern.permute.xlu0 0
    %924 = vperm.xlu0 %923, %v618
    %v925 = vpop.permute.xlu0 %924
    %928 = vset.pattern.permute.xlu0 0
    %929 = vperm.xlu0 %928, %v619
    %v930 = vpop.permute.xlu0 %929
    %933 = vset.pattern.permute.xlu0 0
    %934 = vperm.xlu0 %933, %v620
    %v935 = vpop.permute.xlu0 %934
    %938 = vset.pattern.permute.xlu0 0
    %939 = vperm.xlu0 %938, %v621
    %v940 = vpop.permute.xlu0 %939
    %942 = vmatprep.subr.mxu0 0.0
    %943 = vmatpush1.xpose.msra.mxu0 %v166
    %944 = vmatprep.subr.mxu0 0.0
    %945 = vmatpush1.xpose.msra.mxu0 %v167
    %946 = vmatprep.subr.mxu0 0.0
    %947 = vmatpush1.xpose.msra.mxu0 %v168
    %948 = vmatprep.subr.mxu0 0.0
    %949 = vmatpush1.xpose.msra.mxu0 %v169
    %950 = vmatprep.subr.mxu0 0.0
    %951 = vmatpush1.xpose.msra.mxu0 %v170
    %952 = vmatprep.subr.mxu0 0.0
    %953 = vmatpush1.xpose.msra.mxu0 %v171
    %954 = vmatprep.subr.mxu0 0.0
    %955 = vmatpush1.xpose.msra.mxu0 %v172
    %956 = vmatprep.subr.mxu0 0.0
    %957 = vmatpush1.xpose.msra.mxu0 %v173
    %958 = vmatprep.subr.mxu0 0.0
    %959 = vmatpush1.xpose.msra.mxu0 0.0
    %960 = vmatprep.subr.mxu0 0.0
    %961 = vmatpush1.xpose.msra.mxu0 0.0
    %962 = vmatprep.subr.mxu0 0.0
    %963 = vmatpush1.xpose.msra.mxu0 0.0
    %964 = vmatprep.subr.mxu0 0.0
    %965 = vmatpush1.xpose.msra.mxu0 0.0
    %966 = vmatprep.subr.mxu0 0.0
    %967 = vmatpush1.xpose.msra.mxu0 0.0
    %968 = vmatprep.subr.mxu0 0.0
    %969 = vmatpush1.xpose.msra.mxu0 0.0
    %970 = vmatprep.subr.mxu0 0.0
    %971 = vmatpush1.xpose.msra.mxu0 0.0
    %972 = vmatprep.subr.mxu0 0.0
    %973 = vmatpush1.xpose.msra.mxu0 0.0
    %974 = vmatprep.subr.mxu0 0.0
    %975 = vmatpush1.xpose.msra.mxu0 0.0
    %976 = vmatprep.subr.mxu0 0.0
    %977 = vmatpush1.xpose.msra.mxu0 0.0
    %978 = vmatprep.subr.mxu0 0.0
    %979 = vmatpush1.xpose.msra.mxu0 0.0
    %980 = vmatprep.subr.mxu0 0.0
    %981 = vmatpush1.xpose.msra.mxu0 0.0
    %982 = vmatprep.subr.mxu0 0.0
    %983 = vmatpush1.xpose.msra.mxu0 0.0
    %984 = vmatprep.subr.mxu0 0.0
    %985 = vmatpush1.xpose.msra.mxu0 0.0
    %986 = vmatprep.subr.mxu0 0.0
    %987 = vmatpush1.xpose.msra.mxu0 0.0
    %988 = vmatprep.subr.mxu0 0.0
    %989 = vmatpush1.xpose.msra.mxu0 0.0
    %990 = vmatprep.subr.mxu0 0.0
    %991 = vmatpush1.xpose.msra.mxu0 0.0
    %992 = vmatprep.subr.mxu0 0.0
    %993 = vmatpush1.xpose.msra.mxu0 0.0
    %994 = vmatprep.subr.mxu0 0.0
    %995 = vmatpush1.xpose.msra.mxu0 0.0
    %996 = vmatprep.subr.mxu0 0.0
    %997 = vmatpush1.xpose.msra.mxu0 0.0
    %998 = vmatprep.subr.mxu0 0.0
    %999 = vmatpush1.xpose.msra.mxu0 0.0
    %1000 = vmatprep.subr.mxu0 0.0
    %1001 = vmatpush1.xpose.msra.mxu0 0.0
    %1002 = vmatprep.subr.mxu0 0.0
    %1003 = vmatpush1.xpose.msra.mxu0 0.0
    %1004 = vmatprep.subr.mxu0 0.0
    %1005 = vmatpush1.xpose.msra.mxu0 0.0
    %1006 = vmatprep.mubr.f32.mxu0 0.0
    %1007 = vmatmul.mubr.f32.gmra.mrb[0].mxu0 %v494
    %v1008 = vpop.f32.mrb[0].mxu0
    %v1009 = vadd.f32 %v625, %v1008
    %v1010 = vpop.f32.mrb[0].mxu0
    %1011 = vmatprep.mubr.f32.mxu0 0.0
    %1012 = vmatmul.mubr.f32.gmra.mrb[0].mxu0 %v495
    %v1013 = vpop.f32.mrb[0].mxu0
    %v1014 = vadd.f32 %v630, %v1013
    %v1015 = vpop.f32.mrb[0].mxu0
    %1016 = vmatprep.mubr.f32.mxu0 0.0
    %1017 = vmatmul.mubr.f32.gmra.mrb[0].mxu0 %v496
    %v1018 = vpop.f32.mrb[0].mxu0
    %v1019 = vadd.f32 %v635, %v1018
    %v1020 = vpop.f32.mrb[0].mxu0
    %1021 = vmatprep.mubr.f32.mxu0 0.0
    %1022 = vmatmul.mubr.f32.gmra.mrb[0].mxu0 %v497
    %v1023 = vpop.f32.mrb[0].mxu0
    %v1024 = vadd.f32 %v640, %v1023
    %v1025 = vpop.f32.mrb[0].mxu0
    %1026 = vmatprep.mubr.f32.mxu0 0.0
    %1027 = vmatmul.mubr.f32.gmra.mrb[0].mxu0 %v498
    %v1028 = vpop.f32.mrb[0].mxu0
    %v1029 = vadd.f32 %v645, %v1028
    %v1030 = vpop.f32.mrb[0].mxu0
    %1031 = vmatprep.mubr.f32.mxu0 0.0
    %1032 = vmatmul.mubr.f32.gmra.mrb[0].mxu0 %v499
    %v1033 = vpop.f32.mrb[0].mxu0
    %v1034 = vadd.f32 %v650, %v1033
    %v1035 = vpop.f32.mrb[0].mxu0
    %1036 = vmatprep.mubr.f32.mxu0 0.0
    %1037 = vmatmul.mubr.f32.gmra.mrb[0].mxu0 %v500
    %v1038 = vpop.f32.mrb[0].mxu0
    %v1039 = vadd.f32 %v655, %v1038
    %v1040 = vpop.f32.mrb[0].mxu0
    %1041 = vmatprep.mubr.f32.mxu0 0.0
    %1042 = vmatmul.mubr.f32.gmra.mrb[0].mxu0 %v501
    %v1043 = vpop.f32.mrb[0].mxu0
    %v1044 = vadd.f32 %v660, %v1043
    %v1045 = vpop.f32.mrb[0].mxu0
    %1046 = vmatprep.mubr.f32.mxu0 0.0
    %1047 = vmatmul.mubr.f32.gmra.mrb[0].mxu0 %v502
    %v1048 = vpop.f32.mrb[0].mxu0
    %v1049 = vadd.f32 %v665, %v1048
    %v1050 = vpop.f32.mrb[0].mxu0
    %1051 = vmatprep.mubr.f32.mxu0 0.0
    %1052 = vmatmul.mubr.f32.gmra.mrb[0].mxu0 %v503
    %v1053 = vpop.f32.mrb[0].mxu0
    %v1054 = vadd.f32 %v670, %v1053
    %v1055 = vpop.f32.mrb[0].mxu0
    %1056 = vmatprep.mubr.f32.mxu0 0.0
    %1057 = vmatmul.mubr.f32.gmra.mrb[0].mxu0 %v504
    %v1058 = vpop.f32.mrb[0].mxu0
    %v1059 = vadd.f32 %v675, %v1058
    %v1060 = vpop.f32.mrb[0].mxu0
    %1061 = vmatprep.mubr.f32.mxu0 0.0
    %1062 = vmatmul.mubr.f32.gmra.mrb[0].mxu0 %v505
    %v1063 = vpop.f32.mrb[0].mxu0
    %v1064 = vadd.f32 %v680, %v1063
    %v1065 = vpop.f32.mrb[0].mxu0
    %1066 = vmatprep.mubr.f32.mxu0 0.0
    %1067 = vmatmul.mubr.f32.gmra.mrb[0].mxu0 %v506
    %v1068 = vpop.f32.mrb[0].mxu0
    %v1069 = vadd.f32 %v685, %v1068
    %v1070 = vpop.f32.mrb[0].mxu0
    %1071 = vmatprep.mubr.f32.mxu0 0.0
    %1072 = vmatmul.mubr.f32.gmra.mrb[0].mxu0 %v507
    %v1073 = vpop.f32.mrb[0].mxu0
    %v1074 = vadd.f32 %v690, %v1073
    %v1075 = vpop.f32.mrb[0].mxu0
    %1076 = vmatprep.mubr.f32.mxu0 0.0
    %1077 = vmatmul.mubr.f32.gmra.mrb[0].mxu0 %v508
    %v1078 = vpop.f32.mrb[0].mxu0
    %v1079 = vadd.f32 %v695, %v1078
    %v1080 = vpop.f32.mrb[0].mxu0
    %1081 = vmatprep.mubr.f32.mxu0 0.0
    %1082 = vmatmul.mubr.f32.gmra.mrb[0].mxu0 %v509
    %v1083 = vpop.f32.mrb[0].mxu0
    %v1084 = vadd.f32 %v700, %v1083
    %v1085 = vpop.f32.mrb[0].mxu0
    %1086 = vmatprep.mubr.f32.mxu0 0.0
    %1087 = vmatmul.mubr.f32.gmra.mrb[0].mxu0 %v510
    %v1088 = vpop.f32.mrb[0].mxu0
    %v1089 = vadd.f32 %v705, %v1088
    %v1090 = vpop.f32.mrb[0].mxu0
    %1091 = vmatprep.mubr.f32.mxu0 0.0
    %1092 = vmatmul.mubr.f32.gmra.mrb[0].mxu0 %v511
    %v1093 = vpop.f32.mrb[0].mxu0
    %v1094 = vadd.f32 %v710, %v1093
    %v1095 = vpop.f32.mrb[0].mxu0
    %1096 = vmatprep.mubr.f32.mxu0 0.0
    %1097 = vmatmul.mubr.f32.gmra.mrb[0].mxu0 %v512
    %v1098 = vpop.f32.mrb[0].mxu0
    %v1099 = vadd.f32 %v715, %v1098
    %v1100 = vpop.f32.mrb[0].mxu0
    %1101 = vmatprep.mubr.f32.mxu0 0.0
    %1102 = vmatmul.mubr.f32.gmra.mrb[0].mxu0 %v513
    %v1103 = vpop.f32.mrb[0].mxu0
    %v1104 = vadd.f32 %v720, %v1103
    %v1105 = vpop.f32.mrb[0].mxu0
    %1106 = vmatprep.mubr.f32.mxu0 0.0
    %1107 = vmatmul.mubr.f32.gmra.mrb[0].mxu0 %v514
    %v1108 = vpop.f32.mrb[0].mxu0
    %v1109 = vadd.f32 %v725, %v1108
    %v1110 = vpop.f32.mrb[0].mxu0
    %1111 = vmatprep.mubr.f32.mxu0 0.0
    %1112 = vmatmul.mubr.f32.gmra.mrb[0].mxu0 %v515
    %v1113 = vpop.f32.mrb[0].mxu0
    %v1114 = vadd.f32 %v730, %v1113
    %v1115 = vpop.f32.mrb[0].mxu0
    %1116 = vmatprep.mubr.f32.mxu0 0.0
    %1117 = vmatmul.mubr.f32.gmra.mrb[0].mxu0 %v516
    %v1118 = vpop.f32.mrb[0].mxu0
    %v1119 = vadd.f32 %v735, %v1118
    %v1120 = vpop.f32.mrb[0].mxu0
    %1121 = vmatprep.mubr.f32.mxu0 0.0
    %1122 = vmatmul.mubr.f32.gmra.mrb[0].mxu0 %v517
    %v1123 = vpop.f32.mrb[0].mxu0
    %v1124 = vadd.f32 %v740, %v1123
    %v1125 = vpop.f32.mrb[0].mxu0
    %1126 = vmatprep.mubr.f32.mxu0 0.0
    %1127 = vmatmul.mubr.f32.gmra.mrb[0].mxu0 %v518
    %v1128 = vpop.f32.mrb[0].mxu0
    %v1129 = vadd.f32 %v745, %v1128
    %v1130 = vpop.f32.mrb[0].mxu0
    %1131 = vmatprep.mubr.f32.mxu0 0.0
    %1132 = vmatmul.mubr.f32.gmra.mrb[0].mxu0 %v519
    %v1133 = vpop.f32.mrb[0].mxu0
    %v1134 = vadd.f32 %v750, %v1133
    %v1135 = vpop.f32.mrb[0].mxu0
    %1136 = vmatprep.mubr.f32.mxu0 0.0
    %1137 = vmatmul.mubr.f32.gmra.mrb[0].mxu0 %v520
    %v1138 = vpop.f32.mrb[0].mxu0
    %v1139 = vadd.f32 %v755, %v1138
    %v1140 = vpop.f32.mrb[0].mxu0
    %1141 = vmatprep.mubr.f32.mxu0 0.0
    %1142 = vmatmul.mubr.f32.gmra.mrb[0].mxu0 %v521
    %v1143 = vpop.f32.mrb[0].mxu0
    %v1144 = vadd.f32 %v760, %v1143
    %v1145 = vpop.f32.mrb[0].mxu0
    %1146 = vmatprep.mubr.f32.mxu0 0.0
    %1147 = vmatmul.mubr.f32.gmra.mrb[0].mxu0 %v522
    %v1148 = vpop.f32.mrb[0].mxu0
    %v1149 = vadd.f32 %v765, %v1148
    %v1150 = vpop.f32.mrb[0].mxu0
    %1151 = vmatprep.mubr.f32.mxu0 0.0
    %1152 = vmatmul.mubr.f32.gmra.mrb[0].mxu0 %v523
    %v1153 = vpop.f32.mrb[0].mxu0
    %v1154 = vadd.f32 %v770, %v1153
    %v1155 = vpop.f32.mrb[0].mxu0
    %1156 = vmatprep.mubr.f32.mxu0 0.0
    %1157 = vmatmul.mubr.f32.gmra.mrb[0].mxu0 %v524
    %v1158 = vpop.f32.mrb[0].mxu0
    %v1159 = vadd.f32 %v775, %v1158
    %v1160 = vpop.f32.mrb[0].mxu0
    %1161 = vmatprep.mubr.f32.mxu0 0.0
    %1162 = vmatmul.mubr.f32.gmra.mrb[0].mxu0 %v525
    %v1163 = vpop.f32.mrb[0].mxu0
    %v1164 = vadd.f32 %v780, %v1163
    %v1165 = vpop.f32.mrb[0].mxu0
    %1166 = vmatprep.mubr.f32.mxu0 0.0
    %1167 = vmatmul.mubr.f32.gmra.mrb[0].mxu0 %v526
    %v1168 = vpop.f32.mrb[0].mxu0
    %v1169 = vadd.f32 %v785, %v1168
    %v1170 = vpop.f32.mrb[0].mxu0
    %1171 = vmatprep.mubr.f32.mxu0 0.0
    %1172 = vmatmul.mubr.f32.gmra.mrb[0].mxu0 %v527
    %v1173 = vpop.f32.mrb[0].mxu0
    %v1174 = vadd.f32 %v790, %v1173
    %v1175 = vpop.f32.mrb[0].mxu0
    %1176 = vmatprep.mubr.f32.mxu0 0.0
    %1177 = vmatmul.mubr.f32.gmra.mrb[0].mxu0 %v528
    %v1178 = vpop.f32.mrb[0].mxu0
    %v1179 = vadd.f32 %v795, %v1178
    %v1180 = vpop.f32.mrb[0].mxu0
    %1181 = vmatprep.mubr.f32.mxu0 0.0
    %1182 = vmatmul.mubr.f32.gmra.mrb[0].mxu0 %v529
    %v1183 = vpop.f32.mrb[0].mxu0
    %v1184 = vadd.f32 %v800, %v1183
    %v1185 = vpop.f32.mrb[0].mxu0
    %1186 = vmatprep.mubr.f32.mxu0 0.0
    %1187 = vmatmul.mubr.f32.gmra.mrb[0].mxu0 %v530
    %v1188 = vpop.f32.mrb[0].mxu0
    %v1189 = vadd.f32 %v805, %v1188
    %v1190 = vpop.f32.mrb[0].mxu0
    %1191 = vmatprep.mubr.f32.mxu0 0.0
    %1192 = vmatmul.mubr.f32.gmra.mrb[0].mxu0 %v531
    %v1193 = vpop.f32.mrb[0].mxu0
    %v1194 = vadd.f32 %v810, %v1193
    %v1195 = vpop.f32.mrb[0].mxu0
    %1196 = vmatprep.mubr.f32.mxu0 0.0
    %1197 = vmatmul.mubr.f32.gmra.mrb[0].mxu0 %v532
    %v1198 = vpop.f32.mrb[0].mxu0
    %v1199 = vadd.f32 %v815, %v1198
    %v1200 = vpop.f32.mrb[0].mxu0
    %1201 = vmatprep.mubr.f32.mxu0 0.0
    %1202 = vmatmul.mubr.f32.gmra.mrb[0].mxu0 %v533
    %v1203 = vpop.f32.mrb[0].mxu0
    %v1204 = vadd.f32 %v820, %v1203
    %v1205 = vpop.f32.mrb[0].mxu0
    %1206 = vmatprep.mubr.f32.mxu0 0.0
    %1207 = vmatmul.mubr.f32.gmra.mrb[0].mxu0 %v534
    %v1208 = vpop.f32.mrb[0].mxu0
    %v1209 = vadd.f32 %v825, %v1208
    %v1210 = vpop.f32.mrb[0].mxu0
    %1211 = vmatprep.mubr.f32.mxu0 0.0
    %1212 = vmatmul.mubr.f32.gmra.mrb[0].mxu0 %v535
    %v1213 = vpop.f32.mrb[0].mxu0
    %v1214 = vadd.f32 %v830, %v1213
    %v1215 = vpop.f32.mrb[0].mxu0
    %1216 = vmatprep.mubr.f32.mxu0 0.0
    %1217 = vmatmul.mubr.f32.gmra.mrb[0].mxu0 %v536
    %v1218 = vpop.f32.mrb[0].mxu0
    %v1219 = vadd.f32 %v835, %v1218
    %v1220 = vpop.f32.mrb[0].mxu0
    %1221 = vmatprep.mubr.f32.mxu0 0.0
    %1222 = vmatmul.mubr.f32.gmra.mrb[0].mxu0 %v537
    %v1223 = vpop.f32.mrb[0].mxu0
    %v1224 = vadd.f32 %v840, %v1223
    %v1225 = vpop.f32.mrb[0].mxu0
    %1226 = vmatprep.mubr.f32.mxu0 0.0
    %1227 = vmatmul.mubr.f32.gmra.mrb[0].mxu0 %v538
    %v1228 = vpop.f32.mrb[0].mxu0
    %v1229 = vadd.f32 %v845, %v1228
    %v1230 = vpop.f32.mrb[0].mxu0
    %1231 = vmatprep.mubr.f32.mxu0 0.0
    %1232 = vmatmul.mubr.f32.gmra.mrb[0].mxu0 %v539
    %v1233 = vpop.f32.mrb[0].mxu0
    %v1234 = vadd.f32 %v850, %v1233
    %v1235 = vpop.f32.mrb[0].mxu0
    %1236 = vmatprep.mubr.f32.mxu0 0.0
    %1237 = vmatmul.mubr.f32.gmra.mrb[0].mxu0 %v540
    %v1238 = vpop.f32.mrb[0].mxu0
    %v1239 = vadd.f32 %v855, %v1238
    %v1240 = vpop.f32.mrb[0].mxu0
    %1241 = vmatprep.mubr.f32.mxu0 0.0
    %1242 = vmatmul.mubr.f32.gmra.mrb[0].mxu0 %v541
    %v1243 = vpop.f32.mrb[0].mxu0
    %v1244 = vadd.f32 %v860, %v1243
    %v1245 = vpop.f32.mrb[0].mxu0
    %1246 = vmatprep.mubr.f32.mxu0 0.0
    %1247 = vmatmul.mubr.f32.gmra.mrb[0].mxu0 %v542
    %v1248 = vpop.f32.mrb[0].mxu0
    %v1249 = vadd.f32 %v865, %v1248
    %v1250 = vpop.f32.mrb[0].mxu0
    %1251 = vmatprep.mubr.f32.mxu0 0.0
    %1252 = vmatmul.mubr.f32.gmra.mrb[0].mxu0 %v543
    %v1253 = vpop.f32.mrb[0].mxu0
    %v1254 = vadd.f32 %v870, %v1253
    %v1255 = vpop.f32.mrb[0].mxu0
    %1256 = vmatprep.mubr.f32.mxu0 0.0
    %1257 = vmatmul.mubr.f32.gmra.mrb[0].mxu0 %v544
    %v1258 = vpop.f32.mrb[0].mxu0
    %v1259 = vadd.f32 %v875, %v1258
    %v1260 = vpop.f32.mrb[0].mxu0
    %1261 = vmatprep.mubr.f32.mxu0 0.0
    %1262 = vmatmul.mubr.f32.gmra.mrb[0].mxu0 %v545
    %v1263 = vpop.f32.mrb[0].mxu0
    %v1264 = vadd.f32 %v880, %v1263
    %v1265 = vpop.f32.mrb[0].mxu0
    %1266 = vmatprep.mubr.f32.mxu0 0.0
    %1267 = vmatmul.mubr.f32.gmra.mrb[0].mxu0 %v546
    %v1268 = vpop.f32.mrb[0].mxu0
    %v1269 = vadd.f32 %v885, %v1268
    %v1270 = vpop.f32.mrb[0].mxu0
    %1271 = vmatprep.mubr.f32.mxu0 0.0
    %1272 = vmatmul.mubr.f32.gmra.mrb[0].mxu0 %v547
    %v1273 = vpop.f32.mrb[0].mxu0
    %v1274 = vadd.f32 %v890, %v1273
    %v1275 = vpop.f32.mrb[0].mxu0
    %1276 = vmatprep.mubr.f32.mxu0 0.0
    %1277 = vmatmul.mubr.f32.gmra.mrb[0].mxu0 %v548
    %v1278 = vpop.f32.mrb[0].mxu0
    %v1279 = vadd.f32 %v895, %v1278
    %v1280 = vpop.f32.mrb[0].mxu0
    %1281 = vmatprep.mubr.f32.mxu0 0.0
    %1282 = vmatmul.mubr.f32.gmra.mrb[0].mxu0 %v549
    %v1283 = vpop.f32.mrb[0].mxu0
    %v1284 = vadd.f32 %v900, %v1283
    %v1285 = vpop.f32.mrb[0].mxu0
    %1286 = vmatprep.mubr.f32.mxu0 0.0
    %1287 = vmatmul.mubr.f32.gmra.mrb[0].mxu0 %v550
    %v1288 = vpop.f32.mrb[0].mxu0
    %v1289 = vadd.f32 %v905, %v1288
    %v1290 = vpop.f32.mrb[0].mxu0
    %1291 = vmatprep.mubr.f32.mxu0 0.0
    %1292 = vmatmul.mubr.f32.gmra.mrb[0].mxu0 %v551
    %v1293 = vpop.f32.mrb[0].mxu0
    %v1294 = vadd.f32 %v910, %v1293
    %v1295 = vpop.f32.mrb[0].mxu0
    %1296 = vmatprep.mubr.f32.mxu0 0.0
    %1297 = vmatmul.mubr.f32.gmra.mrb[0].mxu0 %v552
    %v1298 = vpop.f32.mrb[0].mxu0
    %v1299 = vadd.f32 %v915, %v1298
    %v1300 = vpop.f32.mrb[0].mxu0
    %1301 = vmatprep.mubr.f32.mxu0 0.0
    %1302 = vmatmul.mubr.f32.gmra.mrb[0].mxu0 %v553
    %v1303 = vpop.f32.mrb[0].mxu0
    %v1304 = vadd.f32 %v920, %v1303
    %v1305 = vpop.f32.mrb[0].mxu0
    %1306 = vmatprep.mubr.f32.mxu0 0.0
    %1307 = vmatmul.mubr.f32.gmra.mrb[0].mxu0 %v554
    %v1308 = vpop.f32.mrb[0].mxu0
    %v1309 = vadd.f32 %v925, %v1308
    %v1310 = vpop.f32.mrb[0].mxu0
    %1311 = vmatprep.mubr.f32.mxu0 0.0
    %1312 = vmatmul.mubr.f32.gmra.mrb[0].mxu0 %v555
    %v1313 = vpop.f32.mrb[0].mxu0
    %v1314 = vadd.f32 %v930, %v1313
    %v1315 = vpop.f32.mrb[0].mxu0
    %1316 = vmatprep.mubr.f32.mxu0 0.0
    %1317 = vmatmul.mubr.f32.gmra.mrb[0].mxu0 %v556
    %v1318 = vpop.f32.mrb[0].mxu0
    %v1319 = vadd.f32 %v935, %v1318
    %v1320 = vpop.f32.mrb[0].mxu0
    %1321 = vmatprep.mubr.f32.mxu0 0.0
    %1322 = vmatmul.mubr.f32.gmra.mrb[0].mxu0 %v557
    %v1323 = vpop.f32.mrb[0].mxu0
    %v1324 = vadd.f32 %v940, %v1323
    %v1325 = vpop.f32.mrb[0].mxu0
    %1326 = vdwg.mxu0
    %vm1327 = vcmask 523264
    %v1328 = vsel %vm1327, %v1009, -inf
    %v1329 = vsel %vm1327, %v1014, -inf
    %v1330 = vmax.f32 %v1328, %v1329
    %v1331 = vsel %vm1327, %v1019, -inf
    %v1332 = vmax.f32 %v1330, %v1331
    %v1333 = vsel %vm1327, %v1024, -inf
    %v1334 = vmax.f32 %v1332, %v1333
    %v1335 = vsel %vm1327, %v1029, -inf
    %v1336 = vmax.f32 %v1334, %v1335
    %v1337 = vsel %vm1327, %v1034, -inf
    %v1338 = vmax.f32 %v1336, %v1337
    %v1339 = vsel %vm1327, %v1039, -inf
    %v1340 = vmax.f32 %v1338, %v1339
    %v1341 = vsel %vm1327, %v1044, -inf
    %v1342 = vmax.f32 %v1340, %v1341
    %v1343 = vrot.slane %v1342, 4
    %v1344 = vmax.f32 %v1342, %v1343
    %v1345 = vrot.slane %v1344, 2
    %v1346 = vmax.f32 %v1344, %v1345
    %v1347 = vrot.slane %v1346, 1
    %v1348 = vmax.f32 %v1346, %v1347
    %v1349 = vsel %vm1327, %v1049, -inf
    %v1350 = vsel %vm1327, %v1054, -inf
    %v1351 = vmax.f32 %v1349, %v1350
    %v1352 = vsel %vm1327, %v1059, -inf
    %v1353 = vmax.f32 %v1351, %v1352
    %v1354 = vsel %vm1327, %v1064, -inf
    %v1355 = vmax.f32 %v1353, %v1354
    %v1356 = vsel %vm1327, %v1069, -inf
    %v1357 = vmax.f32 %v1355, %v1356
    %v1358 = vsel %vm1327, %v1074, -inf
    %v1359 = vmax.f32 %v1357, %v1358
    %v1360 = vsel %vm1327, %v1079, -inf
    %v1361 = vmax.f32 %v1359, %v1360
    %v1362 = vsel %vm1327, %v1084, -inf
    %v1363 = vmax.f32 %v1361, %v1362
    %v1364 = vrot.slane %v1363, 4
    %v1365 = vmax.f32 %v1363, %v1364
    %v1366 = vrot.slane %v1365, 2
    %v1367 = vmax.f32 %v1365, %v1366
    %v1368 = vrot.slane %v1367, 1
    %v1369 = vmax.f32 %v1367, %v1368
    %v1370 = vsel %vm1327, %v1089, -inf
    %v1371 = vsel %vm1327, %v1094, -inf
    %v1372 = vmax.f32 %v1370, %v1371
    %v1373 = vsel %vm1327, %v1099, -inf
    %v1374 = vmax.f32 %v1372, %v1373
    %v1375 = vsel %vm1327, %v1104, -inf
    %v1376 = vmax.f32 %v1374, %v1375
    %v1377 = vsel %vm1327, %v1109, -inf
    %v1378 = vmax.f32 %v1376, %v1377
    %v1379 = vsel %vm1327, %v1114, -inf
    %v1380 = vmax.f32 %v1378, %v1379
    %v1381 = vsel %vm1327, %v1119, -inf
    %v1382 = vmax.f32 %v1380, %v1381
    %v1383 = vsel %vm1327, %v1124, -inf
    %v1384 = vmax.f32 %v1382, %v1383
    %v1385 = vrot.slane %v1384, 4
    %v1386 = vmax.f32 %v1384, %v1385
    %v1387 = vrot.slane %v1386, 2
    %v1388 = vmax.f32 %v1386, %v1387
    %v1389 = vrot.slane %v1388, 1
    %v1390 = vmax.f32 %v1388, %v1389
    %v1391 = vsel %vm1327, %v1129, -inf
    %v1392 = vsel %vm1327, %v1134, -inf
    %v1393 = vmax.f32 %v1391, %v1392
    %v1394 = vsel %vm1327, %v1139, -inf
    %v1395 = vmax.f32 %v1393, %v1394
    %v1396 = vsel %vm1327, %v1144, -inf
    %v1397 = vmax.f32 %v1395, %v1396
    %v1398 = vsel %vm1327, %v1149, -inf
    %v1399 = vmax.f32 %v1397, %v1398
    %v1400 = vsel %vm1327, %v1154, -inf
    %v1401 = vmax.f32 %v1399, %v1400
    %v1402 = vsel %vm1327, %v1159, -inf
    %v1403 = vmax.f32 %v1401, %v1402
    %v1404 = vsel %vm1327, %v1164, -inf
    %v1405 = vmax.f32 %v1403, %v1404
    %v1406 = vrot.slane %v1405, 4
    %v1407 = vmax.f32 %v1405, %v1406
    %v1408 = vrot.slane %v1407, 2
    %v1409 = vmax.f32 %v1407, %v1408
    %v1410 = vrot.slane %v1409, 1
    %v1411 = vmax.f32 %v1409, %v1410
    %v1412 = vsel %vm1327, %v1169, -inf
    %v1413 = vsel %vm1327, %v1174, -inf
    %v1414 = vmax.f32 %v1412, %v1413
    %v1415 = vsel %vm1327, %v1179, -inf
    %v1416 = vmax.f32 %v1414, %v1415
    %v1417 = vsel %vm1327, %v1184, -inf
    %v1418 = vmax.f32 %v1416, %v1417
    %v1419 = vsel %vm1327, %v1189, -inf
    %v1420 = vmax.f32 %v1418, %v1419
    %v1421 = vsel %vm1327, %v1194, -inf
    %v1422 = vmax.f32 %v1420, %v1421
    %v1423 = vsel %vm1327, %v1199, -inf
    %v1424 = vmax.f32 %v1422, %v1423
    %v1425 = vsel %vm1327, %v1204, -inf
    %v1426 = vmax.f32 %v1424, %v1425
    %v1427 = vrot.slane %v1426, 4
    %v1428 = vmax.f32 %v1426, %v1427
    %v1429 = vrot.slane %v1428, 2
    %v1430 = vmax.f32 %v1428, %v1429
    %v1431 = vrot.slane %v1430, 1
    %v1432 = vmax.f32 %v1430, %v1431
    %v1433 = vsel %vm1327, %v1209, -inf
    %v1434 = vsel %vm1327, %v1214, -inf
    %v1435 = vmax.f32 %v1433, %v1434
    %v1436 = vsel %vm1327, %v1219, -inf
    %v1437 = vmax.f32 %v1435, %v1436
    %v1438 = vsel %vm1327, %v1224, -inf
    %v1439 = vmax.f32 %v1437, %v1438
    %v1440 = vsel %vm1327, %v1229, -inf
    %v1441 = vmax.f32 %v1439, %v1440
    %v1442 = vsel %vm1327, %v1234, -inf
    %v1443 = vmax.f32 %v1441, %v1442
    %v1444 = vsel %vm1327, %v1239, -inf
    %v1445 = vmax.f32 %v1443, %v1444
    %v1446 = vsel %vm1327, %v1244, -inf
    %v1447 = vmax.f32 %v1445, %v1446
    %v1448 = vrot.slane %v1447, 4
    %v1449 = vmax.f32 %v1447, %v1448
    %v1450 = vrot.slane %v1449, 2
    %v1451 = vmax.f32 %v1449, %v1450
    %v1452 = vrot.slane %v1451, 1
    %v1453 = vmax.f32 %v1451, %v1452
    %v1454 = vsel %vm1327, %v1249, -inf
    %v1455 = vsel %vm1327, %v1254, -inf
    %v1456 = vmax.f32 %v1454, %v1455
    %v1457 = vsel %vm1327, %v1259, -inf
    %v1458 = vmax.f32 %v1456, %v1457
    %v1459 = vsel %vm1327, %v1264, -inf
    %v1460 = vmax.f32 %v1458, %v1459
    %v1461 = vsel %vm1327, %v1269, -inf
    %v1462 = vmax.f32 %v1460, %v1461
    %v1463 = vsel %vm1327, %v1274, -inf
    %v1464 = vmax.f32 %v1462, %v1463
    %v1465 = vsel %vm1327, %v1279, -inf
    %v1466 = vmax.f32 %v1464, %v1465
    %v1467 = vsel %vm1327, %v1284, -inf
    %v1468 = vmax.f32 %v1466, %v1467
    %v1469 = vrot.slane %v1468, 4
    %v1470 = vmax.f32 %v1468, %v1469
    %v1471 = vrot.slane %v1470, 2
    %v1472 = vmax.f32 %v1470, %v1471
    %v1473 = vrot.slane %v1472, 1
    %v1474 = vmax.f32 %v1472, %v1473
    %v1475 = vsel %vm1327, %v1289, -inf
    %v1476 = vsel %vm1327, %v1294, -inf
    %v1477 = vmax.f32 %v1475, %v1476
    %v1478 = vsel %vm1327, %v1299, -inf
    %v1479 = vmax.f32 %v1477, %v1478
    %v1480 = vsel %vm1327, %v1304, -inf
    %v1481 = vmax.f32 %v1479, %v1480
    %v1482 = vsel %vm1327, %v1309, -inf
    %v1483 = vmax.f32 %v1481, %v1482
    %v1484 = vsel %vm1327, %v1314, -inf
    %v1485 = vmax.f32 %v1483, %v1484
    %v1486 = vsel %vm1327, %v1319, -inf
    %v1487 = vmax.f32 %v1485, %v1486
    %v1488 = vsel %vm1327, %v1324, -inf
    %v1489 = vmax.f32 %v1487, %v1488
    %v1490 = vrot.slane %v1489, 4
    %v1491 = vmax.f32 %v1489, %v1490
    %v1492 = vrot.slane %v1491, 2
    %v1493 = vmax.f32 %v1491, %v1492
    %v1494 = vrot.slane %v1493, 1
    %v1495 = vmax.f32 %v1493, %v1494
    %v1496 = vld [vmem:[%s3] sm:$0x1]
    %vm1497 = vcmask 516096
    %v1498 = vsel %vm1497, %v1496, 0.0
    %1499 = vadd.xlane.f32.xlu0 %v1498
    %v1500 = vpop.xlane.xlu0 %1499
    %v1501 = vmax.f32 %v1500, 1e-06
    %v1503 = vlaneseq
    %v1504 = vshrl.u32 %v1503, 7
    %v1505 = vsub.s32 0, %v1504
    %v1506 = vrot.slane %v1496, %v1505
    %v1508 = vmul.f32 %v1348, %v1506
    %v1509 = vmul.f32 %v1369, %v1506
    %v1510 = vmul.f32 %v1390, %v1506
    %v1511 = vmul.f32 %v1411, %v1506
    %v1512 = vmul.f32 %v1432, %v1506
    %v1513 = vmul.f32 %v1453, %v1506
    %v1514 = vmul.f32 %v1474, %v1506
    %v1515 = vmul.f32 %v1495, %v1506
    %v1524 = vrot.slane %v1509, 7
    %vm1525 = vcmask 1041409
    %v1526 = vsel %vm1525, %v1524, %v1508
    %v1527 = vrot.slane %v1510, 6
    %vm1528 = vcmask 1042434
    %v1529 = vsel %vm1528, %v1527, %v1526
    %v1530 = vrot.slane %v1511, 5
    %vm1531 = vcmask 1043459
    %v1532 = vsel %vm1531, %v1530, %v1529
    %v1533 = vrot.slane %v1512, 4
    %vm1534 = vcmask 1044484
    %v1535 = vsel %vm1534, %v1533, %v1532
    %v1536 = vrot.slane %v1513, 3
    %vm1537 = vcmask 1045509
    %v1538 = vsel %vm1537, %v1536, %v1535
    %v1539 = vrot.slane %v1514, 2
    %vm1540 = vcmask 1046534
    %v1541 = vsel %vm1540, %v1539, %v1538
    %v1542 = vrot.slane %v1515, 1
    %vm1543 = vcmask 1047559
    %v1544 = vsel %vm1543, %v1542, %v1541
    %v1546 = vsel %vm1327, %v1544, 0.0
    %1547 = vadd.xlane.f32.xlu0 %v1546
    %v1548 = vpop.xlane.xlu0 %1547
    %v1549 = vlaneseq
    %v1550 = vshrl.u32 %v1549, 7
    %v1551 = vsub.s32 0, %v1550
    %v1552 = vrot.slane %v1501, %v1551
    %v1553 = vrcp.pop %v1552
    %v1554 = vmul.f32 %v1548, %v1553
    %v1555 = vmax.f32 %v1554, 0.0
    %vm1556 = vcmask 7168
    %1557 = vst.msk [vmem:[%s6] sm:$0xff] %vm1556, %v1555
    %v1558 = vld [vmem:[%s4] sm:$0xff]
    %v1559 = vld [vmem:[%s4 + $0x8] sm:$0xff]
    %v1560 = vadd.f32 %v1558, %v1559
    %v1561 = vrot.slane %v1560, 4
    %v1562 = vadd.f32 %v1560, %v1561
    %v1563 = vrot.slane %v1562, 2
    %v1564 = vadd.f32 %v1562, %v1563
    %v1565 = vrot.slane %v1564, 1
    %v1566 = vadd.f32 %v1564, %v1565
    %v1567 = vrcp.pop 16.0
    %v1568 = vmul.f32 %v1566, %v1567
    %v1569 = vld [vmem:[#allocation5] sm:$0xff]
    %v1570 = vld [vmem:[#allocation5 + $0x8] sm:$0xff]
    %v1571 = vadd.f32 %v1569, %v1570
    %v1572 = vrot.slane %v1571, 4
    %v1573 = vadd.f32 %v1571, %v1572
    %v1574 = vrot.slane %v1573, 2
    %v1575 = vadd.f32 %v1573, %v1574
    %v1576 = vrot.slane %v1575, 1
    %v1577 = vadd.f32 %v1575, %v1576
    %v1578 = vmul.f32 %v1577, %v1567
    %v1579 = vmul.f32 %v1568, %v1578
    %1580 = vadd.xlane.f32.xlu0 %v1579
    %v1581 = vpop.xlane.xlu0 %1580
    %v1582 = vmul.f32 %v1568, %v1568
    %1583 = vadd.xlane.f32.xlu0 %v1582
    %v1584 = vpop.xlane.xlu0 %1583
    %v1585 = vmax.f32 %v1584, 1e-16
    %v1586 = vrsqrt.pop %v1585
    %v1587 = vmul.f32 %v1578, %v1578
    %1588 = vadd.xlane.f32.xlu0 %v1587
    %v1589 = vpop.xlane.xlu0 %1588
    %v1590 = vmax.f32 %v1589, 1e-16
    %v1591 = vrsqrt.pop %v1590
    %v1592 = vmul.f32 %v1581, %v1586
    %v1593 = vmul.f32 %v1592, %v1591
    %v1594 = vsub.f32 1.0, %v1593
    %vm1595 = vcmask 0
    %1596 = vst.msk [vmem:[#allocation7] sm:$0x1] %vm1595, %v1594
    // Predicated region
    $region34: #{tpu_custom_call.1} parent=1 // pred_check
      _
    $region35: #{tpu_custom_call.1} parent=1 // pred_check_branch
      %1598 = sbr.rel (0) target = $region37
    $region36: #{tpu_custom_call.1} parent=1 // pred_region
      _
    $region37: #{tpu_custom_call.1} parent=1 // pred_fallthru
      _
    // Predicated region
    $region38: #{tpu_custom_call.1} parent=1 // pred_check
      _
    $region39: #{tpu_custom_call.1} parent=1 // pred_check_branch
      %1600 = sbr.rel (0) target = $region41
    $region40: #{tpu_custom_call.1} parent=1 // pred_region
      %s1602 = ssub.s32 16, 16
      %1603 = vsyncadd [#allocation4], %s1602
      %s1605 = sshll.u32 [#allocation7], 4
      %s1606 = int_to_ptr.vmem [resolvable:$true] %s1605
      %1608 = dma.vmem_to_hbm [thread:$0]  %s1606, 16, %s7, [#allocation4]
    $region41: #{tpu_custom_call.1} parent=1 // pred_fallthru
      _
    // Predicated region
    $region42: #{tpu_custom_call.1} parent=1 // pred_check
      _
    $region43: #{tpu_custom_call.1} parent=1 // pred_check_branch
      %1610 = sbr.rel (0) target = $region45
    $region44: #{tpu_custom_call.1} parent=1 // pred_region
      _
    $region45: #{tpu_custom_call.1} parent=1 // pred_fallthru
      _
    // Predicated region
    $region46: #{tpu_custom_call.1} parent=1 // pred_check
      _
    $region47: #{tpu_custom_call.1} parent=1 // pred_check_branch
      %1612 = sbr.rel (0) target = $region49
    $region48: #{tpu_custom_call.1} parent=1 // pred_region
      %1613 = dma.done [#allocation4], 16
    $region49: #{tpu_custom_call.1} parent=1 // pred_fallthru
      _
    %1614 = vsyncpa [#allocation3], 1
    %1615 = vsyncpa [#allocation6], 1
    %1616 = vsyncpa [#allocation4], 1

</llo_original>
